<compile_context>
chip_gen: v5e
topology: v5e:2x2
jax: 0.10.0
libtpu: 0.0.40
codegen_flags: <defaults>
</compile_context>

<pallas_src>
import jax
import jax.numpy as jnp
from jax.experimental import pallas as pl
from jax.experimental.pallas import tpu as pltpu


def make_attention_kernel(n_heads):
    def kernel(q_ref, k_ref, v_ref, wq_ref, wk_ref, wv_ref, wo_ref, b_ref,
               out_ref):
        bt, L, D = q_ref.shape
        S = k_ref.shape[1]
        H = n_heads
        E = D // H
        scale = 1.0 / jnp.sqrt(jnp.float32(E))

        # Flatten the batch tile into MXU rows; cast activations to bf16 once.
        xq = q_ref[...].reshape(bt * L, D).astype(jnp.bfloat16)
        xk = k_ref[...].reshape(bt * S, D).astype(jnp.bfloat16)
        xv = v_ref[...].reshape(bt * S, D).astype(jnp.bfloat16)

        b = b_ref[...]  # (4, D) f32: bq, bk, bv, bo (lane-dense)

        # Full-width fused projections: (bt*L, 128) @ (128, 128), f32 accum,
        # bias added once per projection.
        q_full = jnp.dot(xq, wq_ref[...], preferred_element_type=jnp.float32) + b[0]
        k_full = jnp.dot(xk, wk_ref[...], preferred_element_type=jnp.float32) + b[1]
        v_full = jnp.dot(xv, wv_ref[...], preferred_element_type=jnp.float32) + b[2]

        # Fold the attention scale into q once (full-width, before bf16 cast).
        q_full = (q_full * scale).astype(jnp.bfloat16).reshape(bt, L, D)
        k_full = k_full.astype(jnp.bfloat16).reshape(bt, S, D)
        v_full = v_full.astype(jnp.bfloat16).reshape(bt, S, D)

        # Per-head attention core. H is small and the core is <1% of the MXU
        # work at these shapes; static unroll with static column slices keeps
        # lane offsets compile-time constant.
        ctx_heads = []
        for h in range(H):
            lo = h * E
            q_h = q_full[:, :, lo:lo + E]                     # (bt, L, E)
            k_h = k_full[:, :, lo:lo + E]                     # (bt, S, E)
            v_h = v_full[:, :, lo:lo + E]                     # (bt, S, E)

            # Scores: contract last dims (no k.T materialization); f32 softmax.
            s = jnp.einsum("ble,bse->bls", q_h, k_h,
                           preferred_element_type=jnp.float32)  # (bt, L, S)
            s = s - jnp.max(s, axis=-1, keepdims=True)
            p = jnp.exp(s)
            p = p * pl.reciprocal(jnp.sum(p, axis=-1, keepdims=True),
                                  approx=True)
            ctx_heads.append(
                jnp.einsum("bls,bse->ble", p.astype(jnp.bfloat16), v_h,
                           preferred_element_type=jnp.float32))  # (bt, L, E)

        # Concat heads along features (== transpose(2,1)+view of the spec),
        # then one full-K output projection: (bt*L, 128) @ (128, 128).
        ctx_full = jnp.concatenate(ctx_heads, axis=-1)          # (bt, L, D) f32
        ctx_full = ctx_full.reshape(bt * L, D).astype(jnp.bfloat16)

        y = jnp.dot(ctx_full, wo_ref[...],
                    preferred_element_type=jnp.float32) + b[3]  # (bt*L, D)
        out_ref[...] = y.reshape(bt, L, D).astype(out_ref.dtype)

    return kernel


def _pick_batch_tile(B, L, S, D):
    """Pick a batch tile that (a) always divides B, (b) keeps the f32 in/out
    blocks (double-buffered) within a conservative VMEM budget, (c) reaches
    bt*L >= 128 MXU rows when B allows it, preferring >= 2 grid steps so v7x
    megacore / BlockSpec pipelining have work to overlap, and (d) collapses to
    a single fat step for tiny shapes (per-step overhead dominates there)."""
    divisors = [d for d in range(1, B + 1) if B % d == 0]
    budget = 8 * 1024 * 1024  # activation blocks only; weights are tiny

    def blk_bytes(bt):
        # double-buffered q-in + out (bt*L*D) and k + v (bt*S*D), f32
        return 2 * 4 * D * (2 * bt * L + 2 * bt * S)

    fitting = [d for d in divisors if blk_bytes(d) <= budget] or [1]
    full_rows = [d for d in fitting if d * L >= 128]
    if full_rows:
        cands = [d for d in full_rows if B // d >= 2] or full_rows
        return min(cands)          # smallest tile that fills MXU rows -> more steps
    return max(fitting)            # tiny shapes: one (or few) fat steps


def attention_layer(queries, keys, values, params, *, n_heads, batch_tile=None):
    """queries: (B, L, D); keys/values: (B, S, D). Returns (B, L, D)."""
    B, L, D = queries.shape
    _, S, _ = keys.shape
    H = n_heads
    assert D % H == 0, "d_model must be divisible by n_heads"

    bt = _pick_batch_tile(B, L, S, D) if batch_tile is None else batch_tile
    assert B % bt == 0, "batch must be divisible by the batch tile"

    # Pre-cast full (D, D) weights to bf16 once (halves weight DMA bytes and
    # removes in-kernel weight casts); biases stay f32 for f32-accumulated adds
    # and are packed into one lane-dense (4, D) slab.
    wq = params["wq"].astype(jnp.bfloat16)
    wk = params["wk"].astype(jnp.bfloat16)
    wv = params["wv"].astype(jnp.bfloat16)
    wo = params["wo"].astype(jnp.bfloat16)
    biases = jnp.stack([params["bq"], params["bk"],
                        params["bv"], params["bo"]])            # (4, D) f32

    def rep(shape):
        return pl.BlockSpec(shape, lambda i: tuple(0 for _ in shape))

    return pl.pallas_call(
        make_attention_kernel(H),
        out_shape=jax.ShapeDtypeStruct((B, L, D), queries.dtype),
        grid=(B // bt,),
        in_specs=[
            pl.BlockSpec((bt, L, D), lambda i: (i, 0, 0)),      # queries block
            pl.BlockSpec((bt, S, D), lambda i: (i, 0, 0)),      # keys block
            pl.BlockSpec((bt, S, D), lambda i: (i, 0, 0)),      # values block
            rep((D, D)), rep((D, D)), rep((D, D)), rep((D, D)), # wq, wk, wv, wo
            rep((4, D)),                                        # packed biases
        ],
        out_specs=pl.BlockSpec((bt, L, D), lambda i: (i, 0, 0)),
        compiler_params=pltpu.CompilerParams(
            dimension_semantics=("parallel",),
            vmem_limit_bytes=32 * 1024 * 1024,
        ),
    )(queries, keys, values, wq, wk, wv, wo, biases)


def _init_params(key, d_model):
    ks = jax.random.split(key, 8)
    s = 0.05

    def w(k, shape):
        return (s * jax.random.normal(k, shape)).astype(jnp.float32)

    return {
        "wq": w(ks[0], (d_model, d_model)), "bq": w(ks[1], (d_model,)),
        "wk": w(ks[2], (d_model, d_model)), "bk": w(ks[3], (d_model,)),
        "wv": w(ks[4], (d_model, d_model)), "bv": w(ks[5], (d_model,)),
        "wo": w(ks[6], (d_model, d_model)), "bo": w(ks[7], (d_model,)),
    }


def _reference(q, k, v, p, n_heads):
    """Pure-JAX f32 reference mirroring the PyTorch forward."""
    B, L, D = q.shape
    _, S, _ = k.shape
    H = n_heads
    E = D // H
    Q = (q @ p["wq"] + p["bq"]).reshape(B, L, H, E)
    K = (k @ p["wk"] + p["bk"]).reshape(B, S, H, E)
    V = (v @ p["wv"] + p["bv"]).reshape(B, S, H, E)
    s = jnp.einsum("blhe,bshe->bhls", Q, K) / jnp.sqrt(jnp.float32(E))
    a = jax.nn.softmax(s, axis=-1)
    o = jnp.einsum("bhls,bshe->bhle", a, V)               # (B, H, L, E)
    o = o.transpose(0, 2, 1, 3).reshape(B, L, H * E)      # transpose(2,1)+view
    return o @ p["wo"] + p["bo"]


if __name__ == "__main__":
    key = jax.random.PRNGKey(0)
    kq, kk, kv, kp = jax.random.split(key, 4)

    B, L, S = 4, 8, 8
    d_model, n_heads = 128, 4   # d_model multiple of 128 -> lane-dense blocks

    q = jax.random.normal(kq, (B, L, d_model), dtype=jnp.float32)
    k = jax.random.normal(kk, (B, S, d_model), dtype=jnp.float32)
    v = jax.random.normal(kv, (B, S, d_model), dtype=jnp.float32)
    params = _init_params(kp, d_model)

    out = attention_layer(q, k, v, params, n_heads=n_heads)
    out = jax.block_until_ready(out)

    ref = _reference(q, k, v, params, n_heads)
    assert out.shape == (B, L, d_model)
    max_err = float(jnp.max(jnp.abs(out - ref)))
    # bf16 MXU operands + approx reciprocal vs f32 reference -> loose tolerance.
    assert jnp.allclose(out, ref, atol=2e-2, rtol=2e-2), f"mismatch: {max_err}"

    print("KERNEL_OK")
</pallas_src>

<mosaic_0001>
module attributes {stable_mosaic.version = 11 : i64} {
  func.func @kernel(%arg0: i32, %arg1: memref<4x8x128xf32, #tpu.memory_space<vmem>>, %arg2: memref<4x8x128xf32, #tpu.memory_space<vmem>>, %arg3: memref<4x8x128xf32, #tpu.memory_space<vmem>>, %arg4: memref<128x128xbf16, #tpu.memory_space<vmem>>, %arg5: memref<128x128xbf16, #tpu.memory_space<vmem>>, %arg6: memref<128x128xbf16, #tpu.memory_space<vmem>>, %arg7: memref<128x128xbf16, #tpu.memory_space<vmem>>, %arg8: memref<4x128xf32, #tpu.memory_space<vmem>>, %arg9: memref<4x8x128xf32, #tpu.memory_space<vmem>>) attributes {dimension_semantics = [#tpu.dimension_semantics<parallel>], iteration_bounds = array<i64: 1>, scalar_prefetch = 0 : i64, scratch_operands = 0 : i64, tpu.core_type = #tpu.core_type<tc>, window_params = [{transform_indices = @transform_0, window_bounds = array<i64: 4, 8, 128>}, {transform_indices = @transform_1, window_bounds = array<i64: 4, 8, 128>}, {transform_indices = @transform_2, window_bounds = array<i64: 4, 8, 128>}, {pipeline_mode = #tpu.pipeline_mode<synchronous>, transform_indices = @transform_3, window_bounds = array<i64: 128, 128>}, {pipeline_mode = #tpu.pipeline_mode<synchronous>, transform_indices = @transform_4, window_bounds = array<i64: 128, 128>}, {pipeline_mode = #tpu.pipeline_mode<synchronous>, transform_indices = @transform_5, window_bounds = array<i64: 128, 128>}, {pipeline_mode = #tpu.pipeline_mode<synchronous>, transform_indices = @transform_6, window_bounds = array<i64: 128, 128>}, {pipeline_mode = #tpu.pipeline_mode<synchronous>, transform_indices = @transform_7, window_bounds = array<i64: 4, 128>}, {transform_indices = @transform_8, window_bounds = array<i64: 4, 8, 128>}]} {
    %cst = arith.constant 3.200000e+01 : f32
    %0 = math.sqrt %cst : f32
    %cst_0 = arith.constant 1.000000e+00 : f32
    %1 = arith.divf %cst_0, %0 : f32
    %c0 = arith.constant 0 : index
    %c0_1 = arith.constant 0 : index
    %c0_2 = arith.constant 0 : index
    %2 = vector.load %arg1[%c0, %c0_1, %c0_2] : memref<4x8x128xf32, #tpu.memory_space<vmem>>, vector<4x8x128xf32>
    %3 = vector.shape_cast %2 : vector<4x8x128xf32> to vector<32x128xf32>
    %4 = arith.truncf %3 : vector<32x128xf32> to vector<32x128xbf16>
    %c0_3 = arith.constant 0 : index
    %c0_4 = arith.constant 0 : index
    %c0_5 = arith.constant 0 : index
    %5 = vector.load %arg2[%c0_3, %c0_4, %c0_5] : memref<4x8x128xf32, #tpu.memory_space<vmem>>, vector<4x8x128xf32>
    %6 = vector.shape_cast %5 : vector<4x8x128xf32> to vector<32x128xf32>
    %7 = arith.truncf %6 : vector<32x128xf32> to vector<32x128xbf16>
    %c0_6 = arith.constant 0 : index
    %c0_7 = arith.constant 0 : index
    %c0_8 = arith.constant 0 : index
    %8 = vector.load %arg3[%c0_6, %c0_7, %c0_8] : memref<4x8x128xf32, #tpu.memory_space<vmem>>, vector<4x8x128xf32>
    %9 = vector.shape_cast %8 : vector<4x8x128xf32> to vector<32x128xf32>
    %10 = arith.truncf %9 : vector<32x128xf32> to vector<32x128xbf16>
    %c0_9 = arith.constant 0 : index
    %c0_10 = arith.constant 0 : index
    %11 = vector.load %arg8[%c0_9, %c0_10] : memref<4x128xf32, #tpu.memory_space<vmem>>, vector<4x128xf32>
    %c0_11 = arith.constant 0 : index
    %c0_12 = arith.constant 0 : index
    %12 = vector.load %arg4[%c0_11, %c0_12] : memref<128x128xbf16, #tpu.memory_space<vmem>>, vector<128x128xbf16>
    %cst_13 = arith.constant dense<0.000000e+00> : vector<32x128xf32>
    %13 = tpu.matmul %4, %12, %cst_13 {dimension_numbers = #tpu.dot_dimension_numbers<[1], [0], [0], [1], [0, 0, 1, 1], [], []>} : vector<32x128xbf16>, vector<128x128xbf16>, vector<32x128xf32> -> vector<32x128xf32>
    %14 = vector.extract_strided_slice %11 {offsets = [0, 0], sizes = [1, 128], strides = [1, 1]} : vector<4x128xf32> to vector<1x128xf32>
    %15 = vector.shape_cast %14 : vector<1x128xf32> to vector<128xf32>
    %16 = vector.shape_cast %15 : vector<128xf32> to vector<1x128xf32>
    %17 = vector.broadcast %16 : vector<1x128xf32> to vector<32x128xf32>
    %18 = arith.addf %13, %17 : vector<32x128xf32>
    %c0_14 = arith.constant 0 : index
    %c0_15 = arith.constant 0 : index
    %19 = vector.load %arg5[%c0_14, %c0_15] : memref<128x128xbf16, #tpu.memory_space<vmem>>, vector<128x128xbf16>
    %cst_16 = arith.constant dense<0.000000e+00> : vector<32x128xf32>
    %20 = tpu.matmul %7, %19, %cst_16 {dimension_numbers = #tpu.dot_dimension_numbers<[1], [0], [0], [1], [0, 0, 1, 1], [], []>} : vector<32x128xbf16>, vector<128x128xbf16>, vector<32x128xf32> -> vector<32x128xf32>
    %21 = vector.extract_strided_slice %11 {offsets = [1, 0], sizes = [1, 128], strides = [1, 1]} : vector<4x128xf32> to vector<1x128xf32>
    %22 = vector.shape_cast %21 : vector<1x128xf32> to vector<128xf32>
    %23 = vector.shape_cast %22 : vector<128xf32> to vector<1x128xf32>
    %24 = vector.broadcast %23 : vector<1x128xf32> to vector<32x128xf32>
    %25 = arith.addf %20, %24 : vector<32x128xf32>
    %c0_17 = arith.constant 0 : index
    %c0_18 = arith.constant 0 : index
    %26 = vector.load %arg6[%c0_17, %c0_18] : memref<128x128xbf16, #tpu.memory_space<vmem>>, vector<128x128xbf16>
    %cst_19 = arith.constant dense<0.000000e+00> : vector<32x128xf32>
    %27 = tpu.matmul %10, %26, %cst_19 {dimension_numbers = #tpu.dot_dimension_numbers<[1], [0], [0], [1], [0, 0, 1, 1], [], []>} : vector<32x128xbf16>, vector<128x128xbf16>, vector<32x128xf32> -> vector<32x128xf32>
    %28 = vector.extract_strided_slice %11 {offsets = [2, 0], sizes = [1, 128], strides = [1, 1]} : vector<4x128xf32> to vector<1x128xf32>
    %29 = vector.shape_cast %28 : vector<1x128xf32> to vector<128xf32>
    %30 = vector.shape_cast %29 : vector<128xf32> to vector<1x128xf32>
    %31 = vector.broadcast %30 : vector<1x128xf32> to vector<32x128xf32>
    %32 = arith.addf %27, %31 : vector<32x128xf32>
    %33 = vector.broadcast %1 : f32 to vector<32x128xf32>
    %34 = arith.mulf %18, %33 : vector<32x128xf32>
    %35 = arith.truncf %34 : vector<32x128xf32> to vector<32x128xbf16>
    %36 = vector.shape_cast %35 : vector<32x128xbf16> to vector<4x8x128xbf16>
    %37 = arith.truncf %25 : vector<32x128xf32> to vector<32x128xbf16>
    %38 = vector.shape_cast %37 : vector<32x128xbf16> to vector<4x8x128xbf16>
    %39 = arith.truncf %32 : vector<32x128xf32> to vector<32x128xbf16>
    %40 = vector.shape_cast %39 : vector<32x128xbf16> to vector<4x8x128xbf16>
    %41 = vector.extract_strided_slice %36 {offsets = [0, 0, 0], sizes = [4, 8, 32], strides = [1, 1, 1]} : vector<4x8x128xbf16> to vector<4x8x32xbf16>
    %42 = vector.extract_strided_slice %38 {offsets = [0, 0, 0], sizes = [4, 8, 32], strides = [1, 1, 1]} : vector<4x8x128xbf16> to vector<4x8x32xbf16>
    %43 = vector.extract_strided_slice %40 {offsets = [0, 0, 0], sizes = [4, 8, 32], strides = [1, 1, 1]} : vector<4x8x128xbf16> to vector<4x8x32xbf16>
    "tpu.trace_start"() <{level = 10 : i32, message = "ble,bse->bls"}> : () -> ()
    %cst_20 = arith.constant dense<0.000000e+00> : vector<4x8x8xf32>
    %44 = tpu.matmul %41, %42, %cst_20 {dimension_numbers = #tpu.dot_dimension_numbers<[2], [2], [1], [1], [0, 0, 0, 1, 1, 1], [0], [0]>} : vector<4x8x32xbf16>, vector<4x8x32xbf16>, vector<4x8x8xf32> -> vector<4x8x8xf32>
    "tpu.trace_stop"() : () -> ()
    %cst_21 = arith.constant dense<0xFF800000> : vector<4x8xf32>
    %45 = vector.multi_reduction <maximumf>, %44, %cst_21 [2] : vector<4x8x8xf32> to vector<4x8xf32>
    %46 = vector.shape_cast %45 : vector<4x8xf32> to vector<4x8x1xf32>
    %47 = vector.broadcast %46 : vector<4x8x1xf32> to vector<4x8x8xf32>
    %48 = arith.subf %44, %47 : vector<4x8x8xf32>
    %49 = math.exp %48 : vector<4x8x8xf32>
    %cst_22 = arith.constant dense<0.000000e+00> : vector<4x8xf32>
    %50 = vector.multi_reduction <add>, %49, %cst_22 [2] : vector<4x8x8xf32> to vector<4x8xf32>
    %51 = vector.shape_cast %50 : vector<4x8xf32> to vector<4x8x1xf32>
    %52 = tpu.reciprocal %51 {approx = true} : vector<4x8x1xf32> -> vector<4x8x1xf32>
    %53 = vector.broadcast %52 : vector<4x8x1xf32> to vector<4x8x8xf32>
    %54 = arith.mulf %49, %53 : vector<4x8x8xf32>
    %55 = arith.truncf %54 : vector<4x8x8xf32> to vector<4x8x8xbf16>
    "tpu.trace_start"() <{level = 10 : i32, message = "bls,bse->ble"}> : () -> ()
    %cst_23 = arith.constant dense<0.000000e+00> : vector<4x8x32xf32>
    %56 = tpu.matmul %55, %43, %cst_23 {dimension_numbers = #tpu.dot_dimension_numbers<[2], [1], [1], [2], [0, 0, 0, 1, 1, 2], [0], [0]>} : vector<4x8x8xbf16>, vector<4x8x32xbf16>, vector<4x8x32xf32> -> vector<4x8x32xf32>
    "tpu.trace_stop"() : () -> ()
    %57 = vector.extract_strided_slice %36 {offsets = [0, 0, 32], sizes = [4, 8, 32], strides = [1, 1, 1]} : vector<4x8x128xbf16> to vector<4x8x32xbf16>
    %58 = vector.extract_strided_slice %38 {offsets = [0, 0, 32], sizes = [4, 8, 32], strides = [1, 1, 1]} : vector<4x8x128xbf16> to vector<4x8x32xbf16>
    %59 = vector.extract_strided_slice %40 {offsets = [0, 0, 32], sizes = [4, 8, 32], strides = [1, 1, 1]} : vector<4x8x128xbf16> to vector<4x8x32xbf16>
    "tpu.trace_start"() <{level = 10 : i32, message = "ble,bse->bls"}> : () -> ()
    %cst_24 = arith.constant dense<0.000000e+00> : vector<4x8x8xf32>
    %60 = tpu.matmul %57, %58, %cst_24 {dimension_numbers = #tpu.dot_dimension_numbers<[2], [2], [1], [1], [0, 0, 0, 1, 1, 1], [0], [0]>} : vector<4x8x32xbf16>, vector<4x8x32xbf16>, vector<4x8x8xf32> -> vector<4x8x8xf32>
    "tpu.trace_stop"() : () -> ()
    %cst_25 = arith.constant dense<0xFF800000> : vector<4x8xf32>
    %61 = vector.multi_reduction <maximumf>, %60, %cst_25 [2] : vector<4x8x8xf32> to vector<4x8xf32>
    %62 = vector.shape_cast %61 : vector<4x8xf32> to vector<4x8x1xf32>
    %63 = vector.broadcast %62 : vector<4x8x1xf32> to vector<4x8x8xf32>
    %64 = arith.subf %60, %63 : vector<4x8x8xf32>
    %65 = math.exp %64 : vector<4x8x8xf32>
    %cst_26 = arith.constant dense<0.000000e+00> : vector<4x8xf32>
    %66 = vector.multi_reduction <add>, %65, %cst_26 [2] : vector<4x8x8xf32> to vector<4x8xf32>
    %67 = vector.shape_cast %66 : vector<4x8xf32> to vector<4x8x1xf32>
    %68 = tpu.reciprocal %67 {approx = true} : vector<4x8x1xf32> -> vector<4x8x1xf32>
    %69 = vector.broadcast %68 : vector<4x8x1xf32> to vector<4x8x8xf32>
    %70 = arith.mulf %65, %69 : vector<4x8x8xf32>
    %71 = arith.truncf %70 : vector<4x8x8xf32> to vector<4x8x8xbf16>
    "tpu.trace_start"() <{level = 10 : i32, message = "bls,bse->ble"}> : () -> ()
    %cst_27 = arith.constant dense<0.000000e+00> : vector<4x8x32xf32>
    %72 = tpu.matmul %71, %59, %cst_27 {dimension_numbers = #tpu.dot_dimension_numbers<[2], [1], [1], [2], [0, 0, 0, 1, 1, 2], [0], [0]>} : vector<4x8x8xbf16>, vector<4x8x32xbf16>, vector<4x8x32xf32> -> vector<4x8x32xf32>
    "tpu.trace_stop"() : () -> ()
    %73 = vector.extract_strided_slice %36 {offsets = [0, 0, 64], sizes = [4, 8, 32], strides = [1, 1, 1]} : vector<4x8x128xbf16> to vector<4x8x32xbf16>
    %74 = vector.extract_strided_slice %38 {offsets = [0, 0, 64], sizes = [4, 8, 32], strides = [1, 1, 1]} : vector<4x8x128xbf16> to vector<4x8x32xbf16>
    %75 = vector.extract_strided_slice %40 {offsets = [0, 0, 64], sizes = [4, 8, 32], strides = [1, 1, 1]} : vector<4x8x128xbf16> to vector<4x8x32xbf16>
    "tpu.trace_start"() <{level = 10 : i32, message = "ble,bse->bls"}> : () -> ()
    %cst_28 = arith.constant dense<0.000000e+00> : vector<4x8x8xf32>
    %76 = tpu.matmul %73, %74, %cst_28 {dimension_numbers = #tpu.dot_dimension_numbers<[2], [2], [1], [1], [0, 0, 0, 1, 1, 1], [0], [0]>} : vector<4x8x32xbf16>, vector<4x8x32xbf16>, vector<4x8x8xf32> -> vector<4x8x8xf32>
    "tpu.trace_stop"() : () -> ()
    %cst_29 = arith.constant dense<0xFF800000> : vector<4x8xf32>
    %77 = vector.multi_reduction <maximumf>, %76, %cst_29 [2] : vector<4x8x8xf32> to vector<4x8xf32>
    %78 = vector.shape_cast %77 : vector<4x8xf32> to vector<4x8x1xf32>
    %79 = vector.broadcast %78 : vector<4x8x1xf32> to vector<4x8x8xf32>
    %80 = arith.subf %76, %79 : vector<4x8x8xf32>
    %81 = math.exp %80 : vector<4x8x8xf32>
    %cst_30 = arith.constant dense<0.000000e+00> : vector<4x8xf32>
    %82 = vector.multi_reduction <add>, %81, %cst_30 [2] : vector<4x8x8xf32> to vector<4x8xf32>
    %83 = vector.shape_cast %82 : vector<4x8xf32> to vector<4x8x1xf32>
    %84 = tpu.reciprocal %83 {approx = true} : vector<4x8x1xf32> -> vector<4x8x1xf32>
    %85 = vector.broadcast %84 : vector<4x8x1xf32> to vector<4x8x8xf32>
    %86 = arith.mulf %81, %85 : vector<4x8x8xf32>
    %87 = arith.truncf %86 : vector<4x8x8xf32> to vector<4x8x8xbf16>
    "tpu.trace_start"() <{level = 10 : i32, message = "bls,bse->ble"}> : () -> ()
    %cst_31 = arith.constant dense<0.000000e+00> : vector<4x8x32xf32>
    %88 = tpu.matmul %87, %75, %cst_31 {dimension_numbers = #tpu.dot_dimension_numbers<[2], [1], [1], [2], [0, 0, 0, 1, 1, 2], [0], [0]>} : vector<4x8x8xbf16>, vector<4x8x32xbf16>, vector<4x8x32xf32> -> vector<4x8x32xf32>
    "tpu.trace_stop"() : () -> ()
    %89 = vector.extract_strided_slice %36 {offsets = [0, 0, 96], sizes = [4, 8, 32], strides = [1, 1, 1]} : vector<4x8x128xbf16> to vector<4x8x32xbf16>
    %90 = vector.extract_strided_slice %38 {offsets = [0, 0, 96], sizes = [4, 8, 32], strides = [1, 1, 1]} : vector<4x8x128xbf16> to vector<4x8x32xbf16>
    %91 = vector.extract_strided_slice %40 {offsets = [0, 0, 96], sizes = [4, 8, 32], strides = [1, 1, 1]} : vector<4x8x128xbf16> to vector<4x8x32xbf16>
    "tpu.trace_start"() <{level = 10 : i32, message = "ble,bse->bls"}> : () -> ()
    %cst_32 = arith.constant dense<0.000000e+00> : vector<4x8x8xf32>
    %92 = tpu.matmul %89, %90, %cst_32 {dimension_numbers = #tpu.dot_dimension_numbers<[2], [2], [1], [1], [0, 0, 0, 1, 1, 1], [0], [0]>} : vector<4x8x32xbf16>, vector<4x8x32xbf16>, vector<4x8x8xf32> -> vector<4x8x8xf32>
    "tpu.trace_stop"() : () -> ()
    %cst_33 = arith.constant dense<0xFF800000> : vector<4x8xf32>
    %93 = vector.multi_reduction <maximumf>, %92, %cst_33 [2] : vector<4x8x8xf32> to vector<4x8xf32>
    %94 = vector.shape_cast %93 : vector<4x8xf32> to vector<4x8x1xf32>
    %95 = vector.broadcast %94 : vector<4x8x1xf32> to vector<4x8x8xf32>
    %96 = arith.subf %92, %95 : vector<4x8x8xf32>
    %97 = math.exp %96 : vector<4x8x8xf32>
    %cst_34 = arith.constant dense<0.000000e+00> : vector<4x8xf32>
    %98 = vector.multi_reduction <add>, %97, %cst_34 [2] : vector<4x8x8xf32> to vector<4x8xf32>
    %99 = vector.shape_cast %98 : vector<4x8xf32> to vector<4x8x1xf32>
    %100 = tpu.reciprocal %99 {approx = true} : vector<4x8x1xf32> -> vector<4x8x1xf32>
    %101 = vector.broadcast %100 : vector<4x8x1xf32> to vector<4x8x8xf32>
    %102 = arith.mulf %97, %101 : vector<4x8x8xf32>
    %103 = arith.truncf %102 : vector<4x8x8xf32> to vector<4x8x8xbf16>
    "tpu.trace_start"() <{level = 10 : i32, message = "bls,bse->ble"}> : () -> ()
    %cst_35 = arith.constant dense<0.000000e+00> : vector<4x8x32xf32>
    %104 = tpu.matmul %103, %91, %cst_35 {dimension_numbers = #tpu.dot_dimension_numbers<[2], [1], [1], [2], [0, 0, 0, 1, 1, 2], [0], [0]>} : vector<4x8x8xbf16>, vector<4x8x32xbf16>, vector<4x8x32xf32> -> vector<4x8x32xf32>
    "tpu.trace_stop"() : () -> ()
    %105 = tpu.concatenate %56, %72, %88, %104 in 2 : vector<4x8x32xf32>, vector<4x8x32xf32>, vector<4x8x32xf32>, vector<4x8x32xf32> -> vector<4x8x128xf32>
    %106 = vector.shape_cast %105 : vector<4x8x128xf32> to vector<32x128xf32>
    %107 = arith.truncf %106 : vector<32x128xf32> to vector<32x128xbf16>
    %c0_36 = arith.constant 0 : index
    %c0_37 = arith.constant 0 : index
    %108 = vector.load %arg7[%c0_36, %c0_37] : memref<128x128xbf16, #tpu.memory_space<vmem>>, vector<128x128xbf16>
    %cst_38 = arith.constant dense<0.000000e+00> : vector<32x128xf32>
    %109 = tpu.matmul %107, %108, %cst_38 {dimension_numbers = #tpu.dot_dimension_numbers<[1], [0], [0], [1], [0, 0, 1, 1], [], []>} : vector<32x128xbf16>, vector<128x128xbf16>, vector<32x128xf32> -> vector<32x128xf32>
    %110 = vector.extract_strided_slice %11 {offsets = [3, 0], sizes = [1, 128], strides = [1, 1]} : vector<4x128xf32> to vector<1x128xf32>
    %111 = vector.shape_cast %110 : vector<1x128xf32> to vector<128xf32>
    %112 = vector.shape_cast %111 : vector<128xf32> to vector<1x128xf32>
    %113 = vector.broadcast %112 : vector<1x128xf32> to vector<32x128xf32>
    %114 = arith.addf %109, %113 : vector<32x128xf32>
    %115 = vector.shape_cast %114 : vector<32x128xf32> to vector<4x8x128xf32>
    %c0_39 = arith.constant 0 : index
    %c0_40 = arith.constant 0 : index
    %c0_41 = arith.constant 0 : index
    %116 = vector.load %arg9[%c0_39, %c0_40, %c0_41] : memref<4x8x128xf32, #tpu.memory_space<vmem>>, vector<4x8x128xf32>
    tpu.vector_store %arg9[%c0_39, %c0_40, %c0_41], %115 {strides = array<i32>} : memref<4x8x128xf32, #tpu.memory_space<vmem>>, vector<4x8x128xf32>,
    return
  }
  func.func @transform_0(%arg0: i32) -> (i32, i32, i32) {
    %c0_i32 = arith.constant 0 : i32
    %c0_i32_0 = arith.constant 0 : i32
    %c0_i32_1 = arith.constant 0 : i32
    return %arg0, %c0_i32, %c0_i32_0 : i32, i32, i32
  }
  func.func @transform_1(%arg0: i32) -> (i32, i32, i32) {
    %c0_i32 = arith.constant 0 : i32
    %c0_i32_0 = arith.constant 0 : i32
    %c0_i32_1 = arith.constant 0 : i32
    return %arg0, %c0_i32, %c0_i32_0 : i32, i32, i32
  }
  func.func @transform_2(%arg0: i32) -> (i32, i32, i32) {
    %c0_i32 = arith.constant 0 : i32
    %c0_i32_0 = arith.constant 0 : i32
    %c0_i32_1 = arith.constant 0 : i32
    return %arg0, %c0_i32, %c0_i32_0 : i32, i32, i32
  }
  func.func @transform_3(%arg0: i32) -> (i32, i32) {
    %c0_i32 = arith.constant 0 : i32
    %c0_i32_0 = arith.constant 0 : i32
    %c0_i32_1 = arith.constant 0 : i32
    return %c0_i32, %c0_i32_0 : i32, i32
  }
  func.func @transform_4(%arg0: i32) -> (i32, i32) {
    %c0_i32 = arith.constant 0 : i32
    %c0_i32_0 = arith.constant 0 : i32
    %c0_i32_1 = arith.constant 0 : i32
    return %c0_i32, %c0_i32_0 : i32, i32
  }
  func.func @transform_5(%arg0: i32) -> (i32, i32) {
    %c0_i32 = arith.constant 0 : i32
    %c0_i32_0 = arith.constant 0 : i32
    %c0_i32_1 = arith.constant 0 : i32
    return %c0_i32, %c0_i32_0 : i32, i32
  }
  func.func @transform_6(%arg0: i32) -> (i32, i32) {
    %c0_i32 = arith.constant 0 : i32
    %c0_i32_0 = arith.constant 0 : i32
    %c0_i32_1 = arith.constant 0 : i32
    return %c0_i32, %c0_i32_0 : i32, i32
  }
  func.func @transform_7(%arg0: i32) -> (i32, i32) {
    %c0_i32 = arith.constant 0 : i32
    %c0_i32_0 = arith.constant 0 : i32
    %c0_i32_1 = arith.constant 0 : i32
    return %c0_i32, %c0_i32_0 : i32, i32
  }
  func.func @transform_8(%arg0: i32) -> (i32, i32, i32) {
    %c0_i32 = arith.constant 0 : i32
    %c0_i32_0 = arith.constant 0 : i32
    %c0_i32_1 = arith.constant 0 : i32
    return %arg0, %c0_i32, %c0_i32_0 : i32, i32, i32
  }
}

</mosaic_0001>

<llo_original>
// kernel: tpu_custom_call.1
$region0: #{tpu_custom_call.1}
  #allocation0 [shape = 'u32[]', space=smem, size = 0x4, offset = 0x4, fixed_abs, tag = 'smem constant byte address 0x4 - core index']
  #allocation1 [shape = 'u32[72,128]{1,0:T(1,128)}', space=vmem, size = 0x9000, scoped, tag = 'internal scratch']
  %s0 = inlined_call_operand.hbm [shape: f32[4,8,128], index: 0, kind: input, shape index: {}]
  %s1 = inlined_call_operand.hbm [shape: f32[4,8,128], index: 1, kind: input, shape index: {}]
  %s2 = inlined_call_operand.hbm [shape: f32[4,8,128], index: 2, kind: input, shape index: {}]
  %s3 = inlined_call_operand.hbm [shape: bf16[128,128], index: 3, kind: input, shape index: {}]
  %s4 = inlined_call_operand.hbm [shape: bf16[128,128], index: 4, kind: input, shape index: {}]
  %s5 = inlined_call_operand.hbm [shape: bf16[128,128], index: 5, kind: input, shape index: {}]
  %s6 = inlined_call_operand.hbm [shape: bf16[128,128], index: 6, kind: input, shape index: {}]
  %s7 = inlined_call_operand.vmem [shape: f32[4,128], index: 7, kind: input, shape index: {}]
  %s8 = inlined_call_operand.hbm [shape: f32[4,8,128], index: 8, kind: output, shape index: {}]
  %s9 = sld [smem:[#allocation0]]
  $region70: #{tpu_custom_call.1} parent=0
    _
  %s11 = ssub.s32 1, %s9
  %s12 = scalar_select 0, %s11, %s9
  $region1: #{tpu_custom_call.1} parent=0
    #allocation2 [shape = 'u8[16384]{0}', space=vmem, size = 0x4000, scoped, tag = 'input window, operand 0, single buffered']
    #allocation3 [shape = 's32[1]{0}', space=sflag, size = 0x4, scoped, tag = 'scoped memory for tpu_custom_call.1']
    #allocation4 [shape = 's32[1]{0}', space=sflag, size = 0x4, scoped, tag = 'scoped memory for tpu_custom_call.1']
    #allocation5 [shape = 'u8[16384]{0}', space=vmem, size = 0x4000, scoped, tag = 'input window, operand 1, single buffered']
    #allocation6 [shape = 's32[1]{0}', space=sflag, size = 0x4, scoped, tag = 'scoped memory for tpu_custom_call.1']
    #allocation7 [shape = 'u8[16384]{0}', space=vmem, size = 0x4000, scoped, tag = 'input window, operand 2, single buffered']
    #allocation8 [shape = 'u8[32768]{0}', space=vmem, size = 0x8000, scoped, tag = 'input window, operand 3, single buffered']
    #allocation9 [shape = 's32[1]{0}', space=sflag, size = 0x4, scoped, tag = 'scoped memory for tpu_custom_call.1']
    #allocation10 [shape = 'u8[32768]{0}', space=vmem, size = 0x8000, scoped, tag = 'input window, operand 4, single buffered']
    #allocation11 [shape = 'u8[32768]{0}', space=vmem, size = 0x8000, scoped, tag = 'input window, operand 5, single buffered']
    #allocation12 [shape = 's32[1]{0}', space=sflag, size = 0x4, scoped, tag = 'scoped memory for tpu_custom_call.1']
    #allocation13 [shape = 'u8[32768]{0}', space=vmem, size = 0x8000, scoped, tag = 'input window, operand 6, single buffered']
    #allocation14 [shape = 'u8[16384]{0}', space=vmem, size = 0x4000, scoped, tag = 'output window, operand 0, single buffered']
    %13 = vsyncpa [#allocation3], 0
    %14 = vsyncpa [#allocation6], 0
    %15 = vsyncpa [#allocation9], 0
    %16 = vsyncpa [#allocation12], 0
    %17 = vsyncpa [#allocation4], 0
    // Predicated region
    $region2: #{tpu_custom_call.1} parent=1 // pred_check
      _
    $region3: #{tpu_custom_call.1} parent=1 // pred_check_branch
      %19 = sbr.rel (0) target = $region5
    $region4: #{tpu_custom_call.1} parent=1 // pred_region
      %21 = vsyncadd [#allocation3], 0
      %s22 = sshll.u32 %s0, 4
      %s23 = int_to_ptr.hbm [resolvable:$true] %s22
      %s24 = sshll.u32 [#allocation2], 4
      %s25 = int_to_ptr.vmem [resolvable:$true] %s24
      %30 = dma.hbm_to_vmem [thread:$0]  %s23, 512, %s25, [#allocation3], 128, 128, 8
    $region5: #{tpu_custom_call.1} parent=1 // pred_fallthru
      _
    // Predicated region
    $region6: #{tpu_custom_call.1} parent=1 // pred_check
      _
    $region7: #{tpu_custom_call.1} parent=1 // pred_check_branch
      %32 = sbr.rel (0) target = $region9
    $region8: #{tpu_custom_call.1} parent=1 // pred_region
      %34 = vsyncadd [#allocation6], 0
      %s35 = sshll.u32 %s1, 4
      %s36 = int_to_ptr.hbm [resolvable:$true] %s35
      %s37 = sshll.u32 [#allocation5], 4
      %s38 = int_to_ptr.vmem [resolvable:$true] %s37
      %43 = dma.hbm_to_vmem [thread:$0]  %s36, 512, %s38, [#allocation6], 128, 128, 8
    $region9: #{tpu_custom_call.1} parent=1 // pred_fallthru
      _
    // Predicated region
    $region10: #{tpu_custom_call.1} parent=1 // pred_check
      _
    $region11: #{tpu_custom_call.1} parent=1 // pred_check_branch
      %45 = sbr.rel (0) target = $region13
    $region12: #{tpu_custom_call.1} parent=1 // pred_region
      %47 = vsyncadd [#allocation6], 0
      %s48 = sshll.u32 %s2, 4
      %s49 = int_to_ptr.hbm [resolvable:$true] %s48
      %s50 = sshll.u32 [#allocation7], 4
      %s51 = int_to_ptr.vmem [resolvable:$true] %s50
      %56 = dma.hbm_to_vmem [thread:$0]  %s49, 512, %s51, [#allocation6], 128, 128, 8
    $region13: #{tpu_custom_call.1} parent=1 // pred_fallthru
      _
    // Predicated region
    $region14: #{tpu_custom_call.1} parent=1 // pred_check
      _
    $region15: #{tpu_custom_call.1} parent=1 // pred_check_branch
      %58 = sbr.rel (0) target = $region17
    $region16: #{tpu_custom_call.1} parent=1 // pred_region
      %60 = vsyncadd [#allocation9], 0
      %s61 = sshll.u32 %s3, 4
      %s62 = int_to_ptr.hbm [resolvable:$true] %s61
      %s63 = sshll.u32 [#allocation8], 4
      %s64 = int_to_ptr.vmem [resolvable:$true] %s63
      %69 = dma.hbm_to_vmem [thread:$0]  %s62, 1024, %s64, [#allocation9], 64, 64, 4
    $region17: #{tpu_custom_call.1} parent=1 // pred_fallthru
      _
    // Predicated region
    $region18: #{tpu_custom_call.1} parent=1 // pred_check
      _
    $region19: #{tpu_custom_call.1} parent=1 // pred_check_branch
      %71 = sbr.rel (0) target = $region21
    $region20: #{tpu_custom_call.1} parent=1 // pred_region
      %73 = vsyncadd [#allocation9], 0
      %s74 = sshll.u32 %s4, 4
      %s75 = int_to_ptr.hbm [resolvable:$true] %s74
      %s76 = sshll.u32 [#allocation10], 4
      %s77 = int_to_ptr.vmem [resolvable:$true] %s76
      %82 = dma.hbm_to_vmem [thread:$0]  %s75, 1024, %s77, [#allocation9], 64, 64, 4
    $region21: #{tpu_custom_call.1} parent=1 // pred_fallthru
      _
    // Predicated region
    $region22: #{tpu_custom_call.1} parent=1 // pred_check
      _
    $region23: #{tpu_custom_call.1} parent=1 // pred_check_branch
      %84 = sbr.rel (0) target = $region25
    $region24: #{tpu_custom_call.1} parent=1 // pred_region
      %86 = vsyncadd [#allocation12], 0
      %s87 = sshll.u32 %s5, 4
      %s88 = int_to_ptr.hbm [resolvable:$true] %s87
      %s89 = sshll.u32 [#allocation11], 4
      %s90 = int_to_ptr.vmem [resolvable:$true] %s89
      %95 = dma.hbm_to_vmem [thread:$0]  %s88, 1024, %s90, [#allocation12], 64, 64, 4
    $region25: #{tpu_custom_call.1} parent=1 // pred_fallthru
      _
    // Predicated region
    $region26: #{tpu_custom_call.1} parent=1 // pred_check
      _
    $region27: #{tpu_custom_call.1} parent=1 // pred_check_branch
      %97 = sbr.rel (0) target = $region29
    $region28: #{tpu_custom_call.1} parent=1 // pred_region
      %99 = vsyncadd [#allocation12], 0
      %s100 = sshll.u32 %s6, 4
      %s101 = int_to_ptr.hbm [resolvable:$true] %s100
      %s102 = sshll.u32 [#allocation13], 4
      %s103 = int_to_ptr.vmem [resolvable:$true] %s102
      %108 = dma.hbm_to_vmem [thread:$0]  %s101, 1024, %s103, [#allocation12], 64, 64, 4
    $region29: #{tpu_custom_call.1} parent=1 // pred_fallthru
      _
    // Predicated region
    $region30: #{tpu_custom_call.1} parent=1 // pred_check
      _
    $region31: #{tpu_custom_call.1} parent=1 // pred_check_branch
      %110 = sbr.rel (0) target = $region33
    $region32: #{tpu_custom_call.1} parent=1 // pred_region
      _
    $region33: #{tpu_custom_call.1} parent=1 // pred_fallthru
      _
    // Predicated region
    $region34: #{tpu_custom_call.1} parent=1 // pred_check
      _
    $region35: #{tpu_custom_call.1} parent=1 // pred_check_branch
      %112 = sbr.rel (0) target = $region37
    $region36: #{tpu_custom_call.1} parent=1 // pred_region
      %114 = dma.done [#allocation3], 512
    $region37: #{tpu_custom_call.1} parent=1 // pred_fallthru
      _
    // Predicated region
    $region38: #{tpu_custom_call.1} parent=1 // pred_check
      _
    $region39: #{tpu_custom_call.1} parent=1 // pred_check_branch
      %116 = sbr.rel (0) target = $region41
    $region40: #{tpu_custom_call.1} parent=1 // pred_region
      %118 = dma.done [#allocation6], 512
    $region41: #{tpu_custom_call.1} parent=1 // pred_fallthru
      _
    // Predicated region
    $region42: #{tpu_custom_call.1} parent=1 // pred_check
      _
    $region43: #{tpu_custom_call.1} parent=1 // pred_check_branch
      %120 = sbr.rel (0) target = $region45
    $region44: #{tpu_custom_call.1} parent=1 // pred_region
      %122 = dma.done [#allocation6], 512
    $region45: #{tpu_custom_call.1} parent=1 // pred_fallthru
      _
    // Predicated region
    $region46: #{tpu_custom_call.1} parent=1 // pred_check
      _
    $region47: #{tpu_custom_call.1} parent=1 // pred_check_branch
      %124 = sbr.rel (0) target = $region49
    $region48: #{tpu_custom_call.1} parent=1 // pred_region
      %126 = dma.done [#allocation9], 1024
    $region49: #{tpu_custom_call.1} parent=1 // pred_fallthru
      _
    // Predicated region
    $region50: #{tpu_custom_call.1} parent=1 // pred_check
      _
    $region51: #{tpu_custom_call.1} parent=1 // pred_check_branch
      %128 = sbr.rel (0) target = $region53
    $region52: #{tpu_custom_call.1} parent=1 // pred_region
      %130 = dma.done [#allocation9], 1024
    $region53: #{tpu_custom_call.1} parent=1 // pred_fallthru
      _
    // Predicated region
    $region54: #{tpu_custom_call.1} parent=1 // pred_check
      _
    $region55: #{tpu_custom_call.1} parent=1 // pred_check_branch
      %132 = sbr.rel (0) target = $region57
    $region56: #{tpu_custom_call.1} parent=1 // pred_region
      %134 = dma.done [#allocation12], 1024
    $region57: #{tpu_custom_call.1} parent=1 // pred_fallthru
      _
    // Predicated region
    $region58: #{tpu_custom_call.1} parent=1 // pred_check
      _
    $region59: #{tpu_custom_call.1} parent=1 // pred_check_branch
      %136 = sbr.rel (0) target = $region61
    $region60: #{tpu_custom_call.1} parent=1 // pred_region
      %138 = dma.done [#allocation12], 1024
    $region61: #{tpu_custom_call.1} parent=1 // pred_fallthru
      _
    %v140 = vld [vmem:[#allocation2] sm:$0xff]
    %v141 = vld [vmem:[#allocation2 + $0x8] sm:$0xff]
    %v142 = vld [vmem:[#allocation2 + $0x10] sm:$0xff]
    %v143 = vld [vmem:[#allocation2 + $0x18] sm:$0xff]
    %v144 = vpack.c.bf16 %v141, %v140
    %v145 = vpack.c.bf16 %v143, %v142
    %v146 = vld [vmem:[#allocation5] sm:$0xff]
    %v147 = vld [vmem:[#allocation5 + $0x8] sm:$0xff]
    %v148 = vld [vmem:[#allocation5 + $0x10] sm:$0xff]
    %v149 = vld [vmem:[#allocation5 + $0x18] sm:$0xff]
    %v150 = vpack.c.bf16 %v147, %v146
    %v151 = vpack.c.bf16 %v149, %v148
    %v152 = vld [vmem:[#allocation7] sm:$0xff]
    %v153 = vld [vmem:[#allocation7 + $0x8] sm:$0xff]
    %v154 = vld [vmem:[#allocation7 + $0x10] sm:$0xff]
    %v155 = vld [vmem:[#allocation7 + $0x18] sm:$0xff]
    %v156 = vpack.c.bf16 %v153, %v152
    %v157 = vpack.c.bf16 %v155, %v154
    %v158 = vld [vmem:[%s7] sm:$0xf]
    %v159 = vld [vmem:[#allocation8] sm:$0xf]
    %v160 = vld [vmem:[#allocation8 + $0x4] sm:$0xf]
    %v161 = vld [vmem:[#allocation8 + $0x8] sm:$0xf]
    %v162 = vld [vmem:[#allocation8 + $0xc] sm:$0xf]
    %v163 = vld [vmem:[#allocation8 + $0x10] sm:$0xf]
    %v164 = vld [vmem:[#allocation8 + $0x14] sm:$0xf]
    %v165 = vld [vmem:[#allocation8 + $0x18] sm:$0xf]
    %v166 = vld [vmem:[#allocation8 + $0x1c] sm:$0xf]
    %v167 = vld [vmem:[#allocation8 + $0x20] sm:$0xf]
    %v168 = vld [vmem:[#allocation8 + $0x24] sm:$0xf]
    %v169 = vld [vmem:[#allocation8 + $0x28] sm:$0xf]
    %v170 = vld [vmem:[#allocation8 + $0x2c] sm:$0xf]
    %v171 = vld [vmem:[#allocation8 + $0x30] sm:$0xf]
    %v172 = vld [vmem:[#allocation8 + $0x34] sm:$0xf]
    %v173 = vld [vmem:[#allocation8 + $0x38] sm:$0xf]
    %v174 = vld [vmem:[#allocation8 + $0x3c] sm:$0xf]
    %v175 = vperm.slane %v158, 0
    %v192 = vunpack.c.l.b16 %v159
    %v193 = vunpack.c.l.b16 %v160
    %v194 = vunpack.c.l.b16 %v161
    %v195 = vunpack.c.l.b16 %v162
    %v196 = vunpack.c.l.b16 %v163
    %v197 = vunpack.c.l.b16 %v164
    %v198 = vunpack.c.l.b16 %v165
    %v199 = vunpack.c.l.b16 %v166
    %v200 = vunpack.c.l.b16 %v167
    %v201 = vunpack.c.l.b16 %v168
    %v202 = vunpack.c.l.b16 %v169
    %v203 = vunpack.c.l.b16 %v170
    %v204 = vunpack.c.l.b16 %v171
    %v205 = vunpack.c.l.b16 %v172
    %v206 = vunpack.c.l.b16 %v173
    %v207 = vunpack.c.l.b16 %v174
    %v208 = vpack.c.b16 %v193, %v192
    %v209 = vpack.c.b16 %v195, %v194
    %v210 = vpack.c.b16 %v197, %v196
    %v211 = vpack.c.b16 %v199, %v198
    %v212 = vpack.c.b16 %v201, %v200
    %v213 = vpack.c.b16 %v203, %v202
    %v214 = vpack.c.b16 %v205, %v204
    %v215 = vpack.c.b16 %v207, %v206
    %224 = vmatpush.bf16.msra.mxu0 %v215
    %225 = vmatpush.bf16.msra.mxu0 %v214
    %226 = vmatpush.bf16.msra.mxu0 %v213
    %227 = vmatpush.bf16.msra.mxu0 %v212
    %228 = vmatpush.bf16.msra.mxu0 %v211
    %229 = vmatpush.bf16.msra.mxu0 %v210
    %230 = vmatpush.bf16.msra.mxu0 %v209
    %231 = vmatpush.bf16.msra.mxu0 %v208
    %232 = vmatmul.bf16.gmra.mxu0 %v144
    %v233 = vpop.f32.mrf.mxu0
    %v234 = vadd.f32 %v175, %v233
    %v235 = vpop.f32.mrf.mxu0
    %v236 = vadd.f32 %v175, %v235
    %237 = vmatmul.bf16.gmra.mxu0 %v145
    %v238 = vpop.f32.mrf.mxu0
    %v239 = vadd.f32 %v175, %v238
    %v240 = vpop.f32.mrf.mxu0
    %v241 = vadd.f32 %v175, %v240
    %242 = vdwg.mxu0
    %v243 = vld [vmem:[#allocation10] sm:$0xf]
    %v244 = vld [vmem:[#allocation10 + $0x4] sm:$0xf]
    %v245 = vld [vmem:[#allocation10 + $0x8] sm:$0xf]
    %v246 = vld [vmem:[#allocation10 + $0xc] sm:$0xf]
    %v247 = vld [vmem:[#allocation10 + $0x10] sm:$0xf]
    %v248 = vld [vmem:[#allocation10 + $0x14] sm:$0xf]
    %v249 = vld [vmem:[#allocation10 + $0x18] sm:$0xf]
    %v250 = vld [vmem:[#allocation10 + $0x1c] sm:$0xf]
    %v251 = vld [vmem:[#allocation10 + $0x20] sm:$0xf]
    %v252 = vld [vmem:[#allocation10 + $0x24] sm:$0xf]
    %v253 = vld [vmem:[#allocation10 + $0x28] sm:$0xf]
    %v254 = vld [vmem:[#allocation10 + $0x2c] sm:$0xf]
    %v255 = vld [vmem:[#allocation10 + $0x30] sm:$0xf]
    %v256 = vld [vmem:[#allocation10 + $0x34] sm:$0xf]
    %v257 = vld [vmem:[#allocation10 + $0x38] sm:$0xf]
    %v258 = vld [vmem:[#allocation10 + $0x3c] sm:$0xf]
    %v259 = vperm.slane %v158, 1
    %v276 = vunpack.c.l.b16 %v243
    %v277 = vunpack.c.l.b16 %v244
    %v278 = vunpack.c.l.b16 %v245
    %v279 = vunpack.c.l.b16 %v246
    %v280 = vunpack.c.l.b16 %v247
    %v281 = vunpack.c.l.b16 %v248
    %v282 = vunpack.c.l.b16 %v249
    %v283 = vunpack.c.l.b16 %v250
    %v284 = vunpack.c.l.b16 %v251
    %v285 = vunpack.c.l.b16 %v252
    %v286 = vunpack.c.l.b16 %v253
    %v287 = vunpack.c.l.b16 %v254
    %v288 = vunpack.c.l.b16 %v255
    %v289 = vunpack.c.l.b16 %v256
    %v290 = vunpack.c.l.b16 %v257
    %v291 = vunpack.c.l.b16 %v258
    %v292 = vpack.c.b16 %v277, %v276
    %v293 = vpack.c.b16 %v279, %v278
    %v294 = vpack.c.b16 %v281, %v280
    %v295 = vpack.c.b16 %v283, %v282
    %v296 = vpack.c.b16 %v285, %v284
    %v297 = vpack.c.b16 %v287, %v286
    %v298 = vpack.c.b16 %v289, %v288
    %v299 = vpack.c.b16 %v291, %v290
    %308 = vmatpush.bf16.msra.mxu0 %v299
    %309 = vmatpush.bf16.msra.mxu0 %v298
    %310 = vmatpush.bf16.msra.mxu0 %v297
    %311 = vmatpush.bf16.msra.mxu0 %v296
    %312 = vmatpush.bf16.msra.mxu0 %v295
    %313 = vmatpush.bf16.msra.mxu0 %v294
    %314 = vmatpush.bf16.msra.mxu0 %v293
    %315 = vmatpush.bf16.msra.mxu0 %v292
    %316 = vmatmul.bf16.gmra.mxu0 %v150
    %v317 = vpop.f32.mrf.mxu0
    %v318 = vadd.f32 %v259, %v317
    %v319 = vpop.f32.mrf.mxu0
    %v320 = vadd.f32 %v259, %v319
    %321 = vmatmul.bf16.gmra.mxu0 %v151
    %v322 = vpop.f32.mrf.mxu0
    %v323 = vadd.f32 %v259, %v322
    %v324 = vpop.f32.mrf.mxu0
    %v325 = vadd.f32 %v259, %v324
    %326 = vdwg.mxu0
    %v327 = vld [vmem:[#allocation11] sm:$0xf]
    %v328 = vld [vmem:[#allocation11 + $0x4] sm:$0xf]
    %v329 = vld [vmem:[#allocation11 + $0x8] sm:$0xf]
    %v330 = vld [vmem:[#allocation11 + $0xc] sm:$0xf]
    %v331 = vld [vmem:[#allocation11 + $0x10] sm:$0xf]
    %v332 = vld [vmem:[#allocation11 + $0x14] sm:$0xf]
    %v333 = vld [vmem:[#allocation11 + $0x18] sm:$0xf]
    %v334 = vld [vmem:[#allocation11 + $0x1c] sm:$0xf]
    %v335 = vld [vmem:[#allocation11 + $0x20] sm:$0xf]
    %v336 = vld [vmem:[#allocation11 + $0x24] sm:$0xf]
    %v337 = vld [vmem:[#allocation11 + $0x28] sm:$0xf]
    %v338 = vld [vmem:[#allocation11 + $0x2c] sm:$0xf]
    %v339 = vld [vmem:[#allocation11 + $0x30] sm:$0xf]
    %v340 = vld [vmem:[#allocation11 + $0x34] sm:$0xf]
    %v341 = vld [vmem:[#allocation11 + $0x38] sm:$0xf]
    %v342 = vld [vmem:[#allocation11 + $0x3c] sm:$0xf]
    %v343 = vperm.slane %v158, 2
    %v360 = vunpack.c.l.b16 %v327
    %v361 = vunpack.c.l.b16 %v328
    %v362 = vunpack.c.l.b16 %v329
    %v363 = vunpack.c.l.b16 %v330
    %v364 = vunpack.c.l.b16 %v331
    %v365 = vunpack.c.l.b16 %v332
    %v366 = vunpack.c.l.b16 %v333
    %v367 = vunpack.c.l.b16 %v334
    %v368 = vunpack.c.l.b16 %v335
    %v369 = vunpack.c.l.b16 %v336
    %v370 = vunpack.c.l.b16 %v337
    %v371 = vunpack.c.l.b16 %v338
    %v372 = vunpack.c.l.b16 %v339
    %v373 = vunpack.c.l.b16 %v340
    %v374 = vunpack.c.l.b16 %v341
    %v375 = vunpack.c.l.b16 %v342
    %v376 = vpack.c.b16 %v361, %v360
    %v377 = vpack.c.b16 %v363, %v362
    %v378 = vpack.c.b16 %v365, %v364
    %v379 = vpack.c.b16 %v367, %v366
    %v380 = vpack.c.b16 %v369, %v368
    %v381 = vpack.c.b16 %v371, %v370
    %v382 = vpack.c.b16 %v373, %v372
    %v383 = vpack.c.b16 %v375, %v374
    %392 = vmatpush.bf16.msra.mxu0 %v383
    %393 = vmatpush.bf16.msra.mxu0 %v382
    %394 = vmatpush.bf16.msra.mxu0 %v381
    %395 = vmatpush.bf16.msra.mxu0 %v380
    %396 = vmatpush.bf16.msra.mxu0 %v379
    %397 = vmatpush.bf16.msra.mxu0 %v378
    %398 = vmatpush.bf16.msra.mxu0 %v377
    %399 = vmatpush.bf16.msra.mxu0 %v376
    %400 = vmatmul.bf16.gmra.mxu0 %v156
    %v401 = vpop.f32.mrf.mxu0
    %v402 = vadd.f32 %v343, %v401
    %v403 = vpop.f32.mrf.mxu0
    %v404 = vadd.f32 %v343, %v403
    %405 = vmatmul.bf16.gmra.mxu0 %v157
    %v406 = vpop.f32.mrf.mxu0
    %v407 = vadd.f32 %v343, %v406
    %v408 = vpop.f32.mrf.mxu0
    %v409 = vadd.f32 %v343, %v408
    %410 = vdwg.mxu0
    %v411 = vmul.f32 %v234, 0.17677669
    %v412 = vmul.f32 %v236, 0.17677669
    %v413 = vmul.f32 %v239, 0.17677669
    %v414 = vmul.f32 %v241, 0.17677669
    %v415 = vpack.c.bf16 %v411, %v411
    %v416 = vpack.c.bf16 %v412, %v412
    %v417 = vpack.c.bf16 %v413, %v413
    %v418 = vpack.c.bf16 %v414, %v414
    %v419 = vpack.c.bf16 %v318, %v318
    %v420 = vpack.c.bf16 %v320, %v320
    %v421 = vpack.c.bf16 %v323, %v323
    %v422 = vpack.c.bf16 %v325, %v325
    %v423 = vpack.c.bf16 %v402, %v402
    %v424 = vpack.c.bf16 %v404, %v404
    %v425 = vpack.c.bf16 %v407, %v407
    %v426 = vpack.c.bf16 %v409, %v409
    %vm427 = vcmask 261120
    %v429 = vsel %vm427, %v415, 0
    %v432 = vsel %vm427, %v419, 0
    %434 = vmatpush.bf16.xpose.msra.mxu0 0
    %435 = vmatpush.bf16.xpose.msra.mxu0 0
    %436 = vmatpush.bf16.xpose.msra.mxu0 0
    %437 = vmatpush.bf16.xpose.msra.mxu0 0
    %438 = vmatpush.bf16.xpose.msra.mxu0 0
    %439 = vmatpush.bf16.xpose.msra.mxu0 0
    %440 = vmatpush.bf16.xpose.msra.mxu0 0
    %441 = vmatpush.bf16.xpose.msra.mxu0 %v432
    %442 = vmatmul.bf16.gmra.mxu0 %v429
    %v443 = vpop.f32.mrf.mxu0
    %v444 = vadd.f32 0.0, %v443
    %v445 = vpop.f32.mrf.mxu0
    %446 = vdwg.mxu0
    %v448 = vsel %vm427, %v416, 0
    %v451 = vsel %vm427, %v420, 0
    %453 = vmatpush.bf16.xpose.msra.mxu0 0
    %454 = vmatpush.bf16.xpose.msra.mxu0 0
    %455 = vmatpush.bf16.xpose.msra.mxu0 0
    %456 = vmatpush.bf16.xpose.msra.mxu0 0
    %457 = vmatpush.bf16.xpose.msra.mxu0 0
    %458 = vmatpush.bf16.xpose.msra.mxu0 0
    %459 = vmatpush.bf16.xpose.msra.mxu0 0
    %460 = vmatpush.bf16.xpose.msra.mxu0 %v451
    %461 = vmatmul.bf16.gmra.mxu0 %v448
    %v462 = vpop.f32.mrf.mxu0
    %v463 = vadd.f32 0.0, %v462
    %v464 = vpop.f32.mrf.mxu0
    %465 = vdwg.mxu0
    %v467 = vsel %vm427, %v417, 0
    %v470 = vsel %vm427, %v421, 0
    %472 = vmatpush.bf16.xpose.msra.mxu0 0
    %473 = vmatpush.bf16.xpose.msra.mxu0 0
    %474 = vmatpush.bf16.xpose.msra.mxu0 0
    %475 = vmatpush.bf16.xpose.msra.mxu0 0
    %476 = vmatpush.bf16.xpose.msra.mxu0 0
    %477 = vmatpush.bf16.xpose.msra.mxu0 0
    %478 = vmatpush.bf16.xpose.msra.mxu0 0
    %479 = vmatpush.bf16.xpose.msra.mxu0 %v470
    %480 = vmatmul.bf16.gmra.mxu0 %v467
    %v481 = vpop.f32.mrf.mxu0
    %v482 = vadd.f32 0.0, %v481
    %v483 = vpop.f32.mrf.mxu0
    %484 = vdwg.mxu0
    %v486 = vsel %vm427, %v418, 0
    %v489 = vsel %vm427, %v422, 0
    %491 = vmatpush.bf16.xpose.msra.mxu0 0
    %492 = vmatpush.bf16.xpose.msra.mxu0 0
    %493 = vmatpush.bf16.xpose.msra.mxu0 0
    %494 = vmatpush.bf16.xpose.msra.mxu0 0
    %495 = vmatpush.bf16.xpose.msra.mxu0 0
    %496 = vmatpush.bf16.xpose.msra.mxu0 0
    %497 = vmatpush.bf16.xpose.msra.mxu0 0
    %498 = vmatpush.bf16.xpose.msra.mxu0 %v489
    %499 = vmatmul.bf16.gmra.mxu0 %v486
    %v500 = vpop.f32.mrf.mxu0
    %v501 = vadd.f32 0.0, %v500
    %v502 = vpop.f32.mrf.mxu0
    %503 = vdwg.mxu0
    %vm504 = vcmask 64512
    %v505 = vsel %vm504, %v444, -inf
    %506 = vmax.xlane.f32.xlu0 %v505
    %v507 = vpop.xlane.xlu0 %506
    %v508 = vsel %vm504, %v463, -inf
    %509 = vmax.xlane.f32.xlu0 %v508
    %v510 = vpop.xlane.xlu0 %509
    %v511 = vsel %vm504, %v482, -inf
    %512 = vmax.xlane.f32.xlu0 %v511
    %v513 = vpop.xlane.xlu0 %512
    %v514 = vsel %vm504, %v501, -inf
    %515 = vmax.xlane.f32.xlu0 %v514
    %v516 = vpop.xlane.xlu0 %515
    %v517 = vsub.f32 %v444, %v507
    %v518 = vsub.f32 %v463, %v510
    %v519 = vsub.f32 %v482, %v513
    %v520 = vsub.f32 %v501, %v516
    %v521 = vmul.f32 %v517, 1.442695
    %v522 = vpow.pop %v521
    %v523 = vmul.f32 %v518, 1.442695
    %v524 = vpow.pop %v523
    %v525 = vmul.f32 %v519, 1.442695
    %v526 = vpow.pop %v525
    %v527 = vmul.f32 %v520, 1.442695
    %v528 = vpow.pop %v527
    %v529 = vsel %vm504, %v522, 0.0
    %530 = vadd.xlane.f32.xlu0 %v529
    %v531 = vpop.xlane.xlu0 %530
    %v532 = vsel %vm504, %v524, 0.0
    %533 = vadd.xlane.f32.xlu0 %v532
    %v534 = vpop.xlane.xlu0 %533
    %v535 = vsel %vm504, %v526, 0.0
    %536 = vadd.xlane.f32.xlu0 %v535
    %v537 = vpop.xlane.xlu0 %536
    %v538 = vsel %vm504, %v528, 0.0
    %539 = vadd.xlane.f32.xlu0 %v538
    %v540 = vpop.xlane.xlu0 %539
    %v541 = vrcp.pop %v531
    %v542 = vrcp.pop %v534
    %v543 = vrcp.pop %v537
    %v544 = vrcp.pop %v540
    %v545 = vmul.f32 %v522, %v541
    %v546 = vmul.f32 %v524, %v542
    %v547 = vmul.f32 %v526, %v543
    %v548 = vmul.f32 %v528, %v544
    %v549 = vpack.c.bf16 %v545, %v545
    %v550 = vpack.c.bf16 %v546, %v546
    %v551 = vpack.c.bf16 %v547, %v547
    %v552 = vpack.c.bf16 %v548, %v548
    %v554 = vsel %vm504, %v549, 0
    %vm556 = vcmask 1043456
    %v558 = vsel %vm556, %v423, 0
    %560 = vmatpush.bf16.msra.mxu0 0
    %561 = vmatpush.bf16.msra.mxu0 0
    %562 = vmatpush.bf16.msra.mxu0 0
    %563 = vmatpush.bf16.msra.mxu0 0
    %564 = vmatpush.bf16.msra.mxu0 0
    %565 = vmatpush.bf16.msra.mxu0 0
    %566 = vmatpush.bf16.msra.mxu0 0
    %567 = vmatpush.bf16.msra.mxu0 %v558
    %568 = vmatmul.bf16.gmra.mxu0 %v554
    %v569 = vpop.f32.mrf.mxu0
    %v570 = vadd.f32 0.0, %v569
    %v571 = vpop.f32.mrf.mxu0
    %572 = vdwg.mxu0
    %v574 = vsel %vm504, %v550, 0
    %v577 = vsel %vm556, %v424, 0
    %579 = vmatpush.bf16.msra.mxu0 0
    %580 = vmatpush.bf16.msra.mxu0 0
    %581 = vmatpush.bf16.msra.mxu0 0
    %582 = vmatpush.bf16.msra.mxu0 0
    %583 = vmatpush.bf16.msra.mxu0 0
    %584 = vmatpush.bf16.msra.mxu0 0
    %585 = vmatpush.bf16.msra.mxu0 0
    %586 = vmatpush.bf16.msra.mxu0 %v577
    %587 = vmatmul.bf16.gmra.mxu0 %v574
    %v588 = vpop.f32.mrf.mxu0
    %v589 = vadd.f32 0.0, %v588
    %v590 = vpop.f32.mrf.mxu0
    %591 = vdwg.mxu0
    %v593 = vsel %vm504, %v551, 0
    %v596 = vsel %vm556, %v425, 0
    %598 = vmatpush.bf16.msra.mxu0 0
    %599 = vmatpush.bf16.msra.mxu0 0
    %600 = vmatpush.bf16.msra.mxu0 0
    %601 = vmatpush.bf16.msra.mxu0 0
    %602 = vmatpush.bf16.msra.mxu0 0
    %603 = vmatpush.bf16.msra.mxu0 0
    %604 = vmatpush.bf16.msra.mxu0 0
    %605 = vmatpush.bf16.msra.mxu0 %v596
    %606 = vmatmul.bf16.gmra.mxu0 %v593
    %v607 = vpop.f32.mrf.mxu0
    %v608 = vadd.f32 0.0, %v607
    %v609 = vpop.f32.mrf.mxu0
    %610 = vdwg.mxu0
    %v612 = vsel %vm504, %v552, 0
    %v615 = vsel %vm556, %v426, 0
    %617 = vmatpush.bf16.msra.mxu0 0
    %618 = vmatpush.bf16.msra.mxu0 0
    %619 = vmatpush.bf16.msra.mxu0 0
    %620 = vmatpush.bf16.msra.mxu0 0
    %621 = vmatpush.bf16.msra.mxu0 0
    %622 = vmatpush.bf16.msra.mxu0 0
    %623 = vmatpush.bf16.msra.mxu0 0
    %624 = vmatpush.bf16.msra.mxu0 %v615
    %625 = vmatmul.bf16.gmra.mxu0 %v612
    %v626 = vpop.f32.mrf.mxu0
    %v627 = vadd.f32 0.0, %v626
    %v628 = vpop.f32.mrf.mxu0
    %629 = vdwg.mxu0
    %v631 = vunpack.c.l.b16 %v415
    %v632 = vpack.c.b16 %v631, %v631
    %633 = vrot.lane.b32.xlu0 %v632, 96
    %v634 = vpop.permute.xlu0 %633
    %v636 = vunpack.c.l.b16 %v419
    %v637 = vpack.c.b16 %v636, %v636
    %638 = vrot.lane.b32.xlu0 %v637, 96
    %v639 = vpop.permute.xlu0 %638
    %v641 = vsel %vm427, %v634, 0
    %v644 = vsel %vm427, %v639, 0
    %646 = vmatpush.bf16.xpose.msra.mxu0 0
    %647 = vmatpush.bf16.xpose.msra.mxu0 0
    %648 = vmatpush.bf16.xpose.msra.mxu0 0
    %649 = vmatpush.bf16.xpose.msra.mxu0 0
    %650 = vmatpush.bf16.xpose.msra.mxu0 0
    %651 = vmatpush.bf16.xpose.msra.mxu0 0
    %652 = vmatpush.bf16.xpose.msra.mxu0 0
    %653 = vmatpush.bf16.xpose.msra.mxu0 %v644
    %654 = vmatmul.bf16.gmra.mxu0 %v641
    %v655 = vpop.f32.mrf.mxu0
    %v656 = vadd.f32 0.0, %v655
    %v657 = vpop.f32.mrf.mxu0
    %658 = vdwg.mxu0
    %v660 = vunpack.c.l.b16 %v416
    %v661 = vpack.c.b16 %v660, %v660
    %662 = vrot.lane.b32.xlu0 %v661, 96
    %v663 = vpop.permute.xlu0 %662
    %v665 = vunpack.c.l.b16 %v420
    %v666 = vpack.c.b16 %v665, %v665
    %667 = vrot.lane.b32.xlu0 %v666, 96
    %v668 = vpop.permute.xlu0 %667
    %v670 = vsel %vm427, %v663, 0
    %v673 = vsel %vm427, %v668, 0
    %675 = vmatpush.bf16.xpose.msra.mxu0 0
    %676 = vmatpush.bf16.xpose.msra.mxu0 0
    %677 = vmatpush.bf16.xpose.msra.mxu0 0
    %678 = vmatpush.bf16.xpose.msra.mxu0 0
    %679 = vmatpush.bf16.xpose.msra.mxu0 0
    %680 = vmatpush.bf16.xpose.msra.mxu0 0
    %681 = vmatpush.bf16.xpose.msra.mxu0 0
    %682 = vmatpush.bf16.xpose.msra.mxu0 %v673
    %683 = vmatmul.bf16.gmra.mxu0 %v670
    %v684 = vpop.f32.mrf.mxu0
    %v685 = vadd.f32 0.0, %v684
    %v686 = vpop.f32.mrf.mxu0
    %687 = vdwg.mxu0
    %v689 = vunpack.c.l.b16 %v417
    %v690 = vpack.c.b16 %v689, %v689
    %691 = vrot.lane.b32.xlu0 %v690, 96
    %v692 = vpop.permute.xlu0 %691
    %v694 = vunpack.c.l.b16 %v421
    %v695 = vpack.c.b16 %v694, %v694
    %696 = vrot.lane.b32.xlu0 %v695, 96
    %v697 = vpop.permute.xlu0 %696
    %v699 = vsel %vm427, %v692, 0
    %v702 = vsel %vm427, %v697, 0
    %704 = vmatpush.bf16.xpose.msra.mxu0 0
    %705 = vmatpush.bf16.xpose.msra.mxu0 0
    %706 = vmatpush.bf16.xpose.msra.mxu0 0
    %707 = vmatpush.bf16.xpose.msra.mxu0 0
    %708 = vmatpush.bf16.xpose.msra.mxu0 0
    %709 = vmatpush.bf16.xpose.msra.mxu0 0
    %710 = vmatpush.bf16.xpose.msra.mxu0 0
    %711 = vmatpush.bf16.xpose.msra.mxu0 %v702
    %712 = vmatmul.bf16.gmra.mxu0 %v699
    %v713 = vpop.f32.mrf.mxu0
    %v714 = vadd.f32 0.0, %v713
    %v715 = vpop.f32.mrf.mxu0
    %716 = vdwg.mxu0
    %v718 = vunpack.c.l.b16 %v418
    %v719 = vpack.c.b16 %v718, %v718
    %720 = vrot.lane.b32.xlu0 %v719, 96
    %v721 = vpop.permute.xlu0 %720
    %v723 = vunpack.c.l.b16 %v422
    %v724 = vpack.c.b16 %v723, %v723
    %725 = vrot.lane.b32.xlu0 %v724, 96
    %v726 = vpop.permute.xlu0 %725
    %v728 = vsel %vm427, %v721, 0
    %v731 = vsel %vm427, %v726, 0
    %733 = vmatpush.bf16.xpose.msra.mxu0 0
    %734 = vmatpush.bf16.xpose.msra.mxu0 0
    %735 = vmatpush.bf16.xpose.msra.mxu0 0
    %736 = vmatpush.bf16.xpose.msra.mxu0 0
    %737 = vmatpush.bf16.xpose.msra.mxu0 0
    %738 = vmatpush.bf16.xpose.msra.mxu0 0
    %739 = vmatpush.bf16.xpose.msra.mxu0 0
    %740 = vmatpush.bf16.xpose.msra.mxu0 %v731
    %741 = vmatmul.bf16.gmra.mxu0 %v728
    %v742 = vpop.f32.mrf.mxu0
    %v743 = vadd.f32 0.0, %v742
    %v744 = vpop.f32.mrf.mxu0
    %745 = vdwg.mxu0
    %v746 = vsel %vm504, %v656, -inf
    %747 = vmax.xlane.f32.xlu0 %v746
    %v748 = vpop.xlane.xlu0 %747
    %v749 = vsel %vm504, %v685, -inf
    %750 = vmax.xlane.f32.xlu0 %v749
    %v751 = vpop.xlane.xlu0 %750
    %v752 = vsel %vm504, %v714, -inf
    %753 = vmax.xlane.f32.xlu0 %v752
    %v754 = vpop.xlane.xlu0 %753
    %v755 = vsel %vm504, %v743, -inf
    %756 = vmax.xlane.f32.xlu0 %v755
    %v757 = vpop.xlane.xlu0 %756
    %v758 = vsub.f32 %v656, %v748
    %v759 = vsub.f32 %v685, %v751
    %v760 = vsub.f32 %v714, %v754
    %v761 = vsub.f32 %v743, %v757
    %v762 = vmul.f32 %v758, 1.442695
    %v763 = vpow.pop %v762
    %v764 = vmul.f32 %v759, 1.442695
    %v765 = vpow.pop %v764
    %v766 = vmul.f32 %v760, 1.442695
    %v767 = vpow.pop %v766
    %v768 = vmul.f32 %v761, 1.442695
    %v769 = vpow.pop %v768
    %v770 = vsel %vm504, %v763, 0.0
    %771 = vadd.xlane.f32.xlu0 %v770
    %v772 = vpop.xlane.xlu0 %771
    %v773 = vsel %vm504, %v765, 0.0
    %774 = vadd.xlane.f32.xlu0 %v773
    %v775 = vpop.xlane.xlu0 %774
    %v776 = vsel %vm504, %v767, 0.0
    %777 = vadd.xlane.f32.xlu0 %v776
    %v778 = vpop.xlane.xlu0 %777
    %v779 = vsel %vm504, %v769, 0.0
    %780 = vadd.xlane.f32.xlu0 %v779
    %v781 = vpop.xlane.xlu0 %780
    %v782 = vrcp.pop %v772
    %v783 = vrcp.pop %v775
    %v784 = vrcp.pop %v778
    %v785 = vrcp.pop %v781
    %v786 = vmul.f32 %v763, %v782
    %v787 = vmul.f32 %v765, %v783
    %v788 = vmul.f32 %v767, %v784
    %v789 = vmul.f32 %v769, %v785
    %v790 = vpack.c.bf16 %v786, %v786
    %v791 = vpack.c.bf16 %v787, %v787
    %v792 = vpack.c.bf16 %v788, %v788
    %v793 = vpack.c.bf16 %v789, %v789
    %v795 = vunpack.c.l.b16 %v423
    %v796 = vpack.c.b16 %v795, %v795
    %797 = vrot.lane.b32.xlu0 %v796, 96
    %v798 = vpop.permute.xlu0 %797
    %v800 = vsel %vm504, %v790, 0
    %v803 = vsel %vm556, %v798, 0
    %805 = vmatpush.bf16.msra.mxu0 0
    %806 = vmatpush.bf16.msra.mxu0 0
    %807 = vmatpush.bf16.msra.mxu0 0
    %808 = vmatpush.bf16.msra.mxu0 0
    %809 = vmatpush.bf16.msra.mxu0 0
    %810 = vmatpush.bf16.msra.mxu0 0
    %811 = vmatpush.bf16.msra.mxu0 0
    %812 = vmatpush.bf16.msra.mxu0 %v803
    %813 = vmatmul.bf16.gmra.mxu0 %v800
    %v814 = vpop.f32.mrf.mxu0
    %v815 = vadd.f32 0.0, %v814
    %v816 = vpop.f32.mrf.mxu0
    %817 = vdwg.mxu0
    %v819 = vunpack.c.l.b16 %v424
    %v820 = vpack.c.b16 %v819, %v819
    %821 = vrot.lane.b32.xlu0 %v820, 96
    %v822 = vpop.permute.xlu0 %821
    %v824 = vsel %vm504, %v791, 0
    %v827 = vsel %vm556, %v822, 0
    %829 = vmatpush.bf16.msra.mxu0 0
    %830 = vmatpush.bf16.msra.mxu0 0
    %831 = vmatpush.bf16.msra.mxu0 0
    %832 = vmatpush.bf16.msra.mxu0 0
    %833 = vmatpush.bf16.msra.mxu0 0
    %834 = vmatpush.bf16.msra.mxu0 0
    %835 = vmatpush.bf16.msra.mxu0 0
    %836 = vmatpush.bf16.msra.mxu0 %v827
    %837 = vmatmul.bf16.gmra.mxu0 %v824
    %v838 = vpop.f32.mrf.mxu0
    %v839 = vadd.f32 0.0, %v838
    %v840 = vpop.f32.mrf.mxu0
    %841 = vdwg.mxu0
    %v843 = vunpack.c.l.b16 %v425
    %v844 = vpack.c.b16 %v843, %v843
    %845 = vrot.lane.b32.xlu0 %v844, 96
    %v846 = vpop.permute.xlu0 %845
    %v848 = vsel %vm504, %v792, 0
    %v851 = vsel %vm556, %v846, 0
    %853 = vmatpush.bf16.msra.mxu0 0
    %854 = vmatpush.bf16.msra.mxu0 0
    %855 = vmatpush.bf16.msra.mxu0 0
    %856 = vmatpush.bf16.msra.mxu0 0
    %857 = vmatpush.bf16.msra.mxu0 0
    %858 = vmatpush.bf16.msra.mxu0 0
    %859 = vmatpush.bf16.msra.mxu0 0
    %860 = vmatpush.bf16.msra.mxu0 %v851
    %861 = vmatmul.bf16.gmra.mxu0 %v848
    %v862 = vpop.f32.mrf.mxu0
    %v863 = vadd.f32 0.0, %v862
    %v864 = vpop.f32.mrf.mxu0
    %865 = vdwg.mxu0
    %v867 = vunpack.c.l.b16 %v426
    %v868 = vpack.c.b16 %v867, %v867
    %869 = vrot.lane.b32.xlu0 %v868, 96
    %v870 = vpop.permute.xlu0 %869
    %v872 = vsel %vm504, %v793, 0
    %v875 = vsel %vm556, %v870, 0
    %877 = vmatpush.bf16.msra.mxu0 0
    %878 = vmatpush.bf16.msra.mxu0 0
    %879 = vmatpush.bf16.msra.mxu0 0
    %880 = vmatpush.bf16.msra.mxu0 0
    %881 = vmatpush.bf16.msra.mxu0 0
    %882 = vmatpush.bf16.msra.mxu0 0
    %883 = vmatpush.bf16.msra.mxu0 0
    %884 = vmatpush.bf16.msra.mxu0 %v875
    %885 = vmatmul.bf16.gmra.mxu0 %v872
    %v886 = vpop.f32.mrf.mxu0
    %v887 = vadd.f32 0.0, %v886
    %v888 = vpop.f32.mrf.mxu0
    %889 = vdwg.mxu0
    %890 = vrot.lane.b32.xlu0 %v632, 64
    %v891 = vpop.permute.xlu0 %890
    %892 = vrot.lane.b32.xlu0 %v637, 64
    %v893 = vpop.permute.xlu0 %892
    %v895 = vsel %vm427, %v891, 0
    %v898 = vsel %vm427, %v893, 0
    %900 = vmatpush.bf16.xpose.msra.mxu0 0
    %901 = vmatpush.bf16.xpose.msra.mxu0 0
    %902 = vmatpush.bf16.xpose.msra.mxu0 0
    %903 = vmatpush.bf16.xpose.msra.mxu0 0
    %904 = vmatpush.bf16.xpose.msra.mxu0 0
    %905 = vmatpush.bf16.xpose.msra.mxu0 0
    %906 = vmatpush.bf16.xpose.msra.mxu0 0
    %907 = vmatpush.bf16.xpose.msra.mxu0 %v898
    %908 = vmatmul.bf16.gmra.mxu0 %v895
    %v909 = vpop.f32.mrf.mxu0
    %v910 = vadd.f32 0.0, %v909
    %v911 = vpop.f32.mrf.mxu0
    %912 = vdwg.mxu0
    %913 = vrot.lane.b32.xlu0 %v661, 64
    %v914 = vpop.permute.xlu0 %913
    %915 = vrot.lane.b32.xlu0 %v666, 64
    %v916 = vpop.permute.xlu0 %915
    %v918 = vsel %vm427, %v914, 0
    %v921 = vsel %vm427, %v916, 0
    %923 = vmatpush.bf16.xpose.msra.mxu0 0
    %924 = vmatpush.bf16.xpose.msra.mxu0 0
    %925 = vmatpush.bf16.xpose.msra.mxu0 0
    %926 = vmatpush.bf16.xpose.msra.mxu0 0
    %927 = vmatpush.bf16.xpose.msra.mxu0 0
    %928 = vmatpush.bf16.xpose.msra.mxu0 0
    %929 = vmatpush.bf16.xpose.msra.mxu0 0
    %930 = vmatpush.bf16.xpose.msra.mxu0 %v921
    %931 = vmatmul.bf16.gmra.mxu0 %v918
    %v932 = vpop.f32.mrf.mxu0
    %v933 = vadd.f32 0.0, %v932
    %v934 = vpop.f32.mrf.mxu0
    %935 = vdwg.mxu0
    %936 = vrot.lane.b32.xlu0 %v690, 64
    %v937 = vpop.permute.xlu0 %936
    %938 = vrot.lane.b32.xlu0 %v695, 64
    %v939 = vpop.permute.xlu0 %938
    %v941 = vsel %vm427, %v937, 0
    %v944 = vsel %vm427, %v939, 0
    %946 = vmatpush.bf16.xpose.msra.mxu0 0
    %947 = vmatpush.bf16.xpose.msra.mxu0 0
    %948 = vmatpush.bf16.xpose.msra.mxu0 0
    %949 = vmatpush.bf16.xpose.msra.mxu0 0
    %950 = vmatpush.bf16.xpose.msra.mxu0 0
    %951 = vmatpush.bf16.xpose.msra.mxu0 0
    %952 = vmatpush.bf16.xpose.msra.mxu0 0
    %953 = vmatpush.bf16.xpose.msra.mxu0 %v944
    %954 = vmatmul.bf16.gmra.mxu0 %v941
    %v955 = vpop.f32.mrf.mxu0
    %v956 = vadd.f32 0.0, %v955
    %v957 = vpop.f32.mrf.mxu0
    %958 = vdwg.mxu0
    %959 = vrot.lane.b32.xlu0 %v719, 64
    %v960 = vpop.permute.xlu0 %959
    %961 = vrot.lane.b32.xlu0 %v724, 64
    %v962 = vpop.permute.xlu0 %961
    %v964 = vsel %vm427, %v960, 0
    %v967 = vsel %vm427, %v962, 0
    %969 = vmatpush.bf16.xpose.msra.mxu0 0
    %970 = vmatpush.bf16.xpose.msra.mxu0 0
    %971 = vmatpush.bf16.xpose.msra.mxu0 0
    %972 = vmatpush.bf16.xpose.msra.mxu0 0
    %973 = vmatpush.bf16.xpose.msra.mxu0 0
    %974 = vmatpush.bf16.xpose.msra.mxu0 0
    %975 = vmatpush.bf16.xpose.msra.mxu0 0
    %976 = vmatpush.bf16.xpose.msra.mxu0 %v967
    %977 = vmatmul.bf16.gmra.mxu0 %v964
    %v978 = vpop.f32.mrf.mxu0
    %v979 = vadd.f32 0.0, %v978
    %v980 = vpop.f32.mrf.mxu0
    %981 = vdwg.mxu0
    %v982 = vsel %vm504, %v910, -inf
    %983 = vmax.xlane.f32.xlu0 %v982
    %v984 = vpop.xlane.xlu0 %983
    %v985 = vsel %vm504, %v933, -inf
    %986 = vmax.xlane.f32.xlu0 %v985
    %v987 = vpop.xlane.xlu0 %986
    %v988 = vsel %vm504, %v956, -inf
    %989 = vmax.xlane.f32.xlu0 %v988
    %v990 = vpop.xlane.xlu0 %989
    %v991 = vsel %vm504, %v979, -inf
    %992 = vmax.xlane.f32.xlu0 %v991
    %v993 = vpop.xlane.xlu0 %992
    %v994 = vsub.f32 %v910, %v984
    %v995 = vsub.f32 %v933, %v987
    %v996 = vsub.f32 %v956, %v990
    %v997 = vsub.f32 %v979, %v993
    %v998 = vmul.f32 %v994, 1.442695
    %v999 = vpow.pop %v998
    %v1000 = vmul.f32 %v995, 1.442695
    %v1001 = vpow.pop %v1000
    %v1002 = vmul.f32 %v996, 1.442695
    %v1003 = vpow.pop %v1002
    %v1004 = vmul.f32 %v997, 1.442695
    %v1005 = vpow.pop %v1004
    %v1006 = vsel %vm504, %v999, 0.0
    %1007 = vadd.xlane.f32.xlu0 %v1006
    %v1008 = vpop.xlane.xlu0 %1007
    %v1009 = vsel %vm504, %v1001, 0.0
    %1010 = vadd.xlane.f32.xlu0 %v1009
    %v1011 = vpop.xlane.xlu0 %1010
    %v1012 = vsel %vm504, %v1003, 0.0
    %1013 = vadd.xlane.f32.xlu0 %v1012
    %v1014 = vpop.xlane.xlu0 %1013
    %v1015 = vsel %vm504, %v1005, 0.0
    %1016 = vadd.xlane.f32.xlu0 %v1015
    %v1017 = vpop.xlane.xlu0 %1016
    %v1018 = vrcp.pop %v1008
    %v1019 = vrcp.pop %v1011
    %v1020 = vrcp.pop %v1014
    %v1021 = vrcp.pop %v1017
    %v1022 = vmul.f32 %v999, %v1018
    %v1023 = vmul.f32 %v1001, %v1019
    %v1024 = vmul.f32 %v1003, %v1020
    %v1025 = vmul.f32 %v1005, %v1021
    %v1026 = vpack.c.bf16 %v1022, %v1022
    %v1027 = vpack.c.bf16 %v1023, %v1023
    %v1028 = vpack.c.bf16 %v1024, %v1024
    %v1029 = vpack.c.bf16 %v1025, %v1025
    %1030 = vrot.lane.b32.xlu0 %v796, 64
    %v1031 = vpop.permute.xlu0 %1030
    %v1033 = vsel %vm504, %v1026, 0
    %v1036 = vsel %vm556, %v1031, 0
    %1038 = vmatpush.bf16.msra.mxu0 0
    %1039 = vmatpush.bf16.msra.mxu0 0
    %1040 = vmatpush.bf16.msra.mxu0 0
    %1041 = vmatpush.bf16.msra.mxu0 0
    %1042 = vmatpush.bf16.msra.mxu0 0
    %1043 = vmatpush.bf16.msra.mxu0 0
    %1044 = vmatpush.bf16.msra.mxu0 0
    %1045 = vmatpush.bf16.msra.mxu0 %v1036
    %1046 = vmatmul.bf16.gmra.mxu0 %v1033
    %v1047 = vpop.f32.mrf.mxu0
    %v1048 = vadd.f32 0.0, %v1047
    %v1049 = vpop.f32.mrf.mxu0
    %1050 = vdwg.mxu0
    %1051 = vrot.lane.b32.xlu0 %v820, 64
    %v1052 = vpop.permute.xlu0 %1051
    %v1054 = vsel %vm504, %v1027, 0
    %v1057 = vsel %vm556, %v1052, 0
    %1059 = vmatpush.bf16.msra.mxu0 0
    %1060 = vmatpush.bf16.msra.mxu0 0
    %1061 = vmatpush.bf16.msra.mxu0 0
    %1062 = vmatpush.bf16.msra.mxu0 0
    %1063 = vmatpush.bf16.msra.mxu0 0
    %1064 = vmatpush.bf16.msra.mxu0 0
    %1065 = vmatpush.bf16.msra.mxu0 0
    %1066 = vmatpush.bf16.msra.mxu0 %v1057
    %1067 = vmatmul.bf16.gmra.mxu0 %v1054
    %v1068 = vpop.f32.mrf.mxu0
    %v1069 = vadd.f32 0.0, %v1068
    %v1070 = vpop.f32.mrf.mxu0
    %1071 = vdwg.mxu0
    %1072 = vrot.lane.b32.xlu0 %v844, 64
    %v1073 = vpop.permute.xlu0 %1072
    %v1075 = vsel %vm504, %v1028, 0
    %v1078 = vsel %vm556, %v1073, 0
    %1080 = vmatpush.bf16.msra.mxu0 0
    %1081 = vmatpush.bf16.msra.mxu0 0
    %1082 = vmatpush.bf16.msra.mxu0 0
    %1083 = vmatpush.bf16.msra.mxu0 0
    %1084 = vmatpush.bf16.msra.mxu0 0
    %1085 = vmatpush.bf16.msra.mxu0 0
    %1086 = vmatpush.bf16.msra.mxu0 0
    %1087 = vmatpush.bf16.msra.mxu0 %v1078
    %1088 = vmatmul.bf16.gmra.mxu0 %v1075
    %v1089 = vpop.f32.mrf.mxu0
    %v1090 = vadd.f32 0.0, %v1089
    %v1091 = vpop.f32.mrf.mxu0
    %1092 = vdwg.mxu0
    %1093 = vrot.lane.b32.xlu0 %v868, 64
    %v1094 = vpop.permute.xlu0 %1093
    %v1096 = vsel %vm504, %v1029, 0
    %v1099 = vsel %vm556, %v1094, 0
    %1101 = vmatpush.bf16.msra.mxu0 0
    %1102 = vmatpush.bf16.msra.mxu0 0
    %1103 = vmatpush.bf16.msra.mxu0 0
    %1104 = vmatpush.bf16.msra.mxu0 0
    %1105 = vmatpush.bf16.msra.mxu0 0
    %1106 = vmatpush.bf16.msra.mxu0 0
    %1107 = vmatpush.bf16.msra.mxu0 0
    %1108 = vmatpush.bf16.msra.mxu0 %v1099
    %1109 = vmatmul.bf16.gmra.mxu0 %v1096
    %v1110 = vpop.f32.mrf.mxu0
    %v1111 = vadd.f32 0.0, %v1110
    %v1112 = vpop.f32.mrf.mxu0
    %1113 = vdwg.mxu0
    %1114 = vrot.lane.b32.xlu0 %v632, 32
    %v1115 = vpop.permute.xlu0 %1114
    %1116 = vrot.lane.b32.xlu0 %v637, 32
    %v1117 = vpop.permute.xlu0 %1116
    %v1119 = vsel %vm427, %v1115, 0
    %v1122 = vsel %vm427, %v1117, 0
    %1124 = vmatpush.bf16.xpose.msra.mxu0 0
    %1125 = vmatpush.bf16.xpose.msra.mxu0 0
    %1126 = vmatpush.bf16.xpose.msra.mxu0 0
    %1127 = vmatpush.bf16.xpose.msra.mxu0 0
    %1128 = vmatpush.bf16.xpose.msra.mxu0 0
    %1129 = vmatpush.bf16.xpose.msra.mxu0 0
    %1130 = vmatpush.bf16.xpose.msra.mxu0 0
    %1131 = vmatpush.bf16.xpose.msra.mxu0 %v1122
    %1132 = vmatmul.bf16.gmra.mxu0 %v1119
    %v1133 = vpop.f32.mrf.mxu0
    %v1134 = vadd.f32 0.0, %v1133
    %v1135 = vpop.f32.mrf.mxu0
    %1136 = vdwg.mxu0
    %1137 = vrot.lane.b32.xlu0 %v661, 32
    %v1138 = vpop.permute.xlu0 %1137
    %1139 = vrot.lane.b32.xlu0 %v666, 32
    %v1140 = vpop.permute.xlu0 %1139
    %v1142 = vsel %vm427, %v1138, 0
    %v1145 = vsel %vm427, %v1140, 0
    %1147 = vmatpush.bf16.xpose.msra.mxu0 0
    %1148 = vmatpush.bf16.xpose.msra.mxu0 0
    %1149 = vmatpush.bf16.xpose.msra.mxu0 0
    %1150 = vmatpush.bf16.xpose.msra.mxu0 0
    %1151 = vmatpush.bf16.xpose.msra.mxu0 0
    %1152 = vmatpush.bf16.xpose.msra.mxu0 0
    %1153 = vmatpush.bf16.xpose.msra.mxu0 0
    %1154 = vmatpush.bf16.xpose.msra.mxu0 %v1145
    %1155 = vmatmul.bf16.gmra.mxu0 %v1142
    %v1156 = vpop.f32.mrf.mxu0
    %v1157 = vadd.f32 0.0, %v1156
    %v1158 = vpop.f32.mrf.mxu0
    %1159 = vdwg.mxu0
    %1160 = vrot.lane.b32.xlu0 %v690, 32
    %v1161 = vpop.permute.xlu0 %1160
    %1162 = vrot.lane.b32.xlu0 %v695, 32
    %v1163 = vpop.permute.xlu0 %1162
    %v1165 = vsel %vm427, %v1161, 0
    %v1168 = vsel %vm427, %v1163, 0
    %1170 = vmatpush.bf16.xpose.msra.mxu0 0
    %1171 = vmatpush.bf16.xpose.msra.mxu0 0
    %1172 = vmatpush.bf16.xpose.msra.mxu0 0
    %1173 = vmatpush.bf16.xpose.msra.mxu0 0
    %1174 = vmatpush.bf16.xpose.msra.mxu0 0
    %1175 = vmatpush.bf16.xpose.msra.mxu0 0
    %1176 = vmatpush.bf16.xpose.msra.mxu0 0
    %1177 = vmatpush.bf16.xpose.msra.mxu0 %v1168
    %1178 = vmatmul.bf16.gmra.mxu0 %v1165
    %v1179 = vpop.f32.mrf.mxu0
    %v1180 = vadd.f32 0.0, %v1179
    %v1181 = vpop.f32.mrf.mxu0
    %1182 = vdwg.mxu0
    %1183 = vrot.lane.b32.xlu0 %v719, 32
    %v1184 = vpop.permute.xlu0 %1183
    %1185 = vrot.lane.b32.xlu0 %v724, 32
    %v1186 = vpop.permute.xlu0 %1185
    %v1188 = vsel %vm427, %v1184, 0
    %v1191 = vsel %vm427, %v1186, 0
    %1193 = vmatpush.bf16.xpose.msra.mxu0 0
    %1194 = vmatpush.bf16.xpose.msra.mxu0 0
    %1195 = vmatpush.bf16.xpose.msra.mxu0 0
    %1196 = vmatpush.bf16.xpose.msra.mxu0 0
    %1197 = vmatpush.bf16.xpose.msra.mxu0 0
    %1198 = vmatpush.bf16.xpose.msra.mxu0 0
    %1199 = vmatpush.bf16.xpose.msra.mxu0 0
    %1200 = vmatpush.bf16.xpose.msra.mxu0 %v1191
    %1201 = vmatmul.bf16.gmra.mxu0 %v1188
    %v1202 = vpop.f32.mrf.mxu0
    %v1203 = vadd.f32 0.0, %v1202
    %v1204 = vpop.f32.mrf.mxu0
    %1205 = vdwg.mxu0
    %v1206 = vsel %vm504, %v1134, -inf
    %1207 = vmax.xlane.f32.xlu0 %v1206
    %v1208 = vpop.xlane.xlu0 %1207
    %v1209 = vsel %vm504, %v1157, -inf
    %1210 = vmax.xlane.f32.xlu0 %v1209
    %v1211 = vpop.xlane.xlu0 %1210
    %v1212 = vsel %vm504, %v1180, -inf
    %1213 = vmax.xlane.f32.xlu0 %v1212
    %v1214 = vpop.xlane.xlu0 %1213
    %v1215 = vsel %vm504, %v1203, -inf
    %1216 = vmax.xlane.f32.xlu0 %v1215
    %v1217 = vpop.xlane.xlu0 %1216
    %v1218 = vsub.f32 %v1134, %v1208
    %v1219 = vsub.f32 %v1157, %v1211
    %v1220 = vsub.f32 %v1180, %v1214
    %v1221 = vsub.f32 %v1203, %v1217
    %v1222 = vmul.f32 %v1218, 1.442695
    %v1223 = vpow.pop %v1222
    %v1224 = vmul.f32 %v1219, 1.442695
    %v1225 = vpow.pop %v1224
    %v1226 = vmul.f32 %v1220, 1.442695
    %v1227 = vpow.pop %v1226
    %v1228 = vmul.f32 %v1221, 1.442695
    %v1229 = vpow.pop %v1228
    %v1230 = vsel %vm504, %v1223, 0.0
    %1231 = vadd.xlane.f32.xlu0 %v1230
    %v1232 = vpop.xlane.xlu0 %1231
    %v1233 = vsel %vm504, %v1225, 0.0
    %1234 = vadd.xlane.f32.xlu0 %v1233
    %v1235 = vpop.xlane.xlu0 %1234
    %v1236 = vsel %vm504, %v1227, 0.0
    %1237 = vadd.xlane.f32.xlu0 %v1236
    %v1238 = vpop.xlane.xlu0 %1237
    %v1239 = vsel %vm504, %v1229, 0.0
    %1240 = vadd.xlane.f32.xlu0 %v1239
    %v1241 = vpop.xlane.xlu0 %1240
    %v1242 = vrcp.pop %v1232
    %v1243 = vrcp.pop %v1235
    %v1244 = vrcp.pop %v1238
    %v1245 = vrcp.pop %v1241
    %v1246 = vmul.f32 %v1223, %v1242
    %v1247 = vmul.f32 %v1225, %v1243
    %v1248 = vmul.f32 %v1227, %v1244
    %v1249 = vmul.f32 %v1229, %v1245
    %v1250 = vpack.c.bf16 %v1246, %v1246
    %v1251 = vpack.c.bf16 %v1247, %v1247
    %v1252 = vpack.c.bf16 %v1248, %v1248
    %v1253 = vpack.c.bf16 %v1249, %v1249
    %1254 = vrot.lane.b32.xlu0 %v796, 32
    %v1255 = vpop.permute.xlu0 %1254
    %v1257 = vsel %vm504, %v1250, 0
    %v1260 = vsel %vm556, %v1255, 0
    %1262 = vmatpush.bf16.msra.mxu0 0
    %1263 = vmatpush.bf16.msra.mxu0 0
    %1264 = vmatpush.bf16.msra.mxu0 0
    %1265 = vmatpush.bf16.msra.mxu0 0
    %1266 = vmatpush.bf16.msra.mxu0 0
    %1267 = vmatpush.bf16.msra.mxu0 0
    %1268 = vmatpush.bf16.msra.mxu0 0
    %1269 = vmatpush.bf16.msra.mxu0 %v1260
    %1270 = vmatmul.bf16.gmra.mxu0 %v1257
    %v1271 = vpop.f32.mrf.mxu0
    %v1272 = vadd.f32 0.0, %v1271
    %v1273 = vpop.f32.mrf.mxu0
    %1274 = vdwg.mxu0
    %1275 = vrot.lane.b32.xlu0 %v820, 32
    %v1276 = vpop.permute.xlu0 %1275
    %v1278 = vsel %vm504, %v1251, 0
    %v1281 = vsel %vm556, %v1276, 0
    %1283 = vmatpush.bf16.msra.mxu0 0
    %1284 = vmatpush.bf16.msra.mxu0 0
    %1285 = vmatpush.bf16.msra.mxu0 0
    %1286 = vmatpush.bf16.msra.mxu0 0
    %1287 = vmatpush.bf16.msra.mxu0 0
    %1288 = vmatpush.bf16.msra.mxu0 0
    %1289 = vmatpush.bf16.msra.mxu0 0
    %1290 = vmatpush.bf16.msra.mxu0 %v1281
    %1291 = vmatmul.bf16.gmra.mxu0 %v1278
    %v1292 = vpop.f32.mrf.mxu0
    %v1293 = vadd.f32 0.0, %v1292
    %v1294 = vpop.f32.mrf.mxu0
    %1295 = vdwg.mxu0
    %1296 = vrot.lane.b32.xlu0 %v844, 32
    %v1297 = vpop.permute.xlu0 %1296
    %v1299 = vsel %vm504, %v1252, 0
    %v1302 = vsel %vm556, %v1297, 0
    %1304 = vmatpush.bf16.msra.mxu0 0
    %1305 = vmatpush.bf16.msra.mxu0 0
    %1306 = vmatpush.bf16.msra.mxu0 0
    %1307 = vmatpush.bf16.msra.mxu0 0
    %1308 = vmatpush.bf16.msra.mxu0 0
    %1309 = vmatpush.bf16.msra.mxu0 0
    %1310 = vmatpush.bf16.msra.mxu0 0
    %1311 = vmatpush.bf16.msra.mxu0 %v1302
    %1312 = vmatmul.bf16.gmra.mxu0 %v1299
    %v1313 = vpop.f32.mrf.mxu0
    %v1314 = vadd.f32 0.0, %v1313
    %v1315 = vpop.f32.mrf.mxu0
    %1316 = vdwg.mxu0
    %1317 = vrot.lane.b32.xlu0 %v868, 32
    %v1318 = vpop.permute.xlu0 %1317
    %v1320 = vsel %vm504, %v1253, 0
    %v1323 = vsel %vm556, %v1318, 0
    %1325 = vmatpush.bf16.msra.mxu0 0
    %1326 = vmatpush.bf16.msra.mxu0 0
    %1327 = vmatpush.bf16.msra.mxu0 0
    %1328 = vmatpush.bf16.msra.mxu0 0
    %1329 = vmatpush.bf16.msra.mxu0 0
    %1330 = vmatpush.bf16.msra.mxu0 0
    %1331 = vmatpush.bf16.msra.mxu0 0
    %1332 = vmatpush.bf16.msra.mxu0 %v1323
    %1333 = vmatmul.bf16.gmra.mxu0 %v1320
    %v1334 = vpop.f32.mrf.mxu0
    %v1335 = vadd.f32 0.0, %v1334
    %v1336 = vpop.f32.mrf.mxu0
    %1337 = vdwg.mxu0
    %1342 = vrot.lane.b32.xlu0 %v815, 32
    %v1343 = vpop.permute.xlu0 %1342
    %1344 = vrot.lane.b32.xlu0 %v839, 32
    %v1345 = vpop.permute.xlu0 %1344
    %1346 = vrot.lane.b32.xlu0 %v863, 32
    %v1347 = vpop.permute.xlu0 %1346
    %1348 = vrot.lane.b32.xlu0 %v887, 32
    %v1349 = vpop.permute.xlu0 %1348
    %1358 = vrot.lane.b32.xlu0 %v1048, 64
    %v1359 = vpop.permute.xlu0 %1358
    %1360 = vrot.lane.b32.xlu0 %v1069, 64
    %v1361 = vpop.permute.xlu0 %1360
    %1362 = vrot.lane.b32.xlu0 %v1090, 64
    %v1363 = vpop.permute.xlu0 %1362
    %1364 = vrot.lane.b32.xlu0 %v1111, 64
    %v1365 = vpop.permute.xlu0 %1364
    %1374 = vrot.lane.b32.xlu0 %v1272, 96
    %v1375 = vpop.permute.xlu0 %1374
    %1376 = vrot.lane.b32.xlu0 %v1293, 96
    %v1377 = vpop.permute.xlu0 %1376
    %1378 = vrot.lane.b32.xlu0 %v1314, 96
    %v1379 = vpop.permute.xlu0 %1378
    %1380 = vrot.lane.b32.xlu0 %v1335, 96
    %v1381 = vpop.permute.xlu0 %1380
    %v1386 = vsel %vm427, %v570, %v1343
    %v1387 = vsel %vm427, %v589, %v1345
    %v1388 = vsel %vm427, %v608, %v1347
    %v1389 = vsel %vm427, %v627, %v1349
    %vm1390 = vcmask 523264
    %v1391 = vsel %vm1390, %v1386, %v1359
    %v1392 = vsel %vm1390, %v1387, %v1361
    %v1393 = vsel %vm1390, %v1388, %v1363
    %v1394 = vsel %vm1390, %v1389, %v1365
    %vm1395 = vcmask 785408
    %v1396 = vsel %vm1395, %v1391, %v1375
    %v1397 = vsel %vm1395, %v1392, %v1377
    %v1398 = vsel %vm1395, %v1393, %v1379
    %v1399 = vsel %vm1395, %v1394, %v1381
    %v1400 = vpack.c.bf16 %v1397, %v1396
    %v1401 = vpack.c.bf16 %v1399, %v1398
    %v1402 = vld [vmem:[#allocation13] sm:$0xf]
    %v1403 = vld [vmem:[#allocation13 + $0x4] sm:$0xf]
    %v1404 = vld [vmem:[#allocation13 + $0x8] sm:$0xf]
    %v1405 = vld [vmem:[#allocation13 + $0xc] sm:$0xf]
    %v1406 = vld [vmem:[#allocation13 + $0x10] sm:$0xf]
    %v1407 = vld [vmem:[#allocation13 + $0x14] sm:$0xf]
    %v1408 = vld [vmem:[#allocation13 + $0x18] sm:$0xf]
    %v1409 = vld [vmem:[#allocation13 + $0x1c] sm:$0xf]
    %v1410 = vld [vmem:[#allocation13 + $0x20] sm:$0xf]
    %v1411 = vld [vmem:[#allocation13 + $0x24] sm:$0xf]
    %v1412 = vld [vmem:[#allocation13 + $0x28] sm:$0xf]
    %v1413 = vld [vmem:[#allocation13 + $0x2c] sm:$0xf]
    %v1414 = vld [vmem:[#allocation13 + $0x30] sm:$0xf]
    %v1415 = vld [vmem:[#allocation13 + $0x34] sm:$0xf]
    %v1416 = vld [vmem:[#allocation13 + $0x38] sm:$0xf]
    %v1417 = vld [vmem:[#allocation13 + $0x3c] sm:$0xf]
    %v1418 = vperm.slane %v158, 3
    %v1435 = vunpack.c.l.b16 %v1402
    %v1436 = vunpack.c.l.b16 %v1403
    %v1437 = vunpack.c.l.b16 %v1404
    %v1438 = vunpack.c.l.b16 %v1405
    %v1439 = vunpack.c.l.b16 %v1406
    %v1440 = vunpack.c.l.b16 %v1407
    %v1441 = vunpack.c.l.b16 %v1408
    %v1442 = vunpack.c.l.b16 %v1409
    %v1443 = vunpack.c.l.b16 %v1410
    %v1444 = vunpack.c.l.b16 %v1411
    %v1445 = vunpack.c.l.b16 %v1412
    %v1446 = vunpack.c.l.b16 %v1413
    %v1447 = vunpack.c.l.b16 %v1414
    %v1448 = vunpack.c.l.b16 %v1415
    %v1449 = vunpack.c.l.b16 %v1416
    %v1450 = vunpack.c.l.b16 %v1417
    %v1451 = vpack.c.b16 %v1436, %v1435
    %v1452 = vpack.c.b16 %v1438, %v1437
    %v1453 = vpack.c.b16 %v1440, %v1439
    %v1454 = vpack.c.b16 %v1442, %v1441
    %v1455 = vpack.c.b16 %v1444, %v1443
    %v1456 = vpack.c.b16 %v1446, %v1445
    %v1457 = vpack.c.b16 %v1448, %v1447
    %v1458 = vpack.c.b16 %v1450, %v1449
    %1467 = vmatpush.bf16.msra.mxu0 %v1458
    %1468 = vmatpush.bf16.msra.mxu0 %v1457
    %1469 = vmatpush.bf16.msra.mxu0 %v1456
    %1470 = vmatpush.bf16.msra.mxu0 %v1455
    %1471 = vmatpush.bf16.msra.mxu0 %v1454
    %1472 = vmatpush.bf16.msra.mxu0 %v1453
    %1473 = vmatpush.bf16.msra.mxu0 %v1452
    %1474 = vmatpush.bf16.msra.mxu0 %v1451
    %1475 = vmatmul.bf16.gmra.mxu0 %v1400
    %v1476 = vpop.f32.mrf.mxu0
    %v1477 = vadd.f32 %v1418, %v1476
    %v1478 = vpop.f32.mrf.mxu0
    %v1479 = vadd.f32 %v1418, %v1478
    %1480 = vmatmul.bf16.gmra.mxu0 %v1401
    %v1481 = vpop.f32.mrf.mxu0
    %v1482 = vadd.f32 %v1418, %v1481
    %v1483 = vpop.f32.mrf.mxu0
    %v1484 = vadd.f32 %v1418, %v1483
    %1485 = vdwg.mxu0
    %1486 = vst [vmem:[#allocation14] sm:$0xff] %v1477
    %1487 = vst [vmem:[#allocation14 + $0x8] sm:$0xff] %v1479
    %1488 = vst [vmem:[#allocation14 + $0x10] sm:$0xff] %v1482
    %1489 = vst [vmem:[#allocation14 + $0x18] sm:$0xff] %v1484
    // Predicated region
    $region62: #{tpu_custom_call.1} parent=1 // pred_check
      _
    $region63: #{tpu_custom_call.1} parent=1 // pred_check_branch
      %1491 = sbr.rel (0) target = $region65
    $region64: #{tpu_custom_call.1} parent=1 // pred_region
      %1493 = vsyncadd [#allocation4], 0
      %s1494 = sshll.u32 [#allocation14], 4
      %s1495 = int_to_ptr.vmem [resolvable:$true] %s1494
      %s1496 = sshll.u32 %s8, 4
      %s1497 = int_to_ptr.hbm [resolvable:$true] %s1496
      %1502 = dma.vmem_to_hbm [thread:$0]  %s1495, 512, %s1497, [#allocation4], 128, 128, 8
    $region65: #{tpu_custom_call.1} parent=1 // pred_fallthru
      _
    // Predicated region
    $region66: #{tpu_custom_call.1} parent=1 // pred_check
      _
    $region67: #{tpu_custom_call.1} parent=1 // pred_check_branch
      %1504 = sbr.rel (0) target = $region69
    $region68: #{tpu_custom_call.1} parent=1 // pred_region
      %1506 = dma.done [#allocation4], 512
    $region69: #{tpu_custom_call.1} parent=1 // pred_fallthru
      _
    %1507 = vsyncpa [#allocation3], 1
    %1508 = vsyncpa [#allocation6], 1
    %1509 = vsyncpa [#allocation9], 1
    %1510 = vsyncpa [#allocation12], 1
    %1511 = vsyncpa [#allocation4], 1

</llo_original>
